<compile_context>
chip_gen: v5e
topology: v5e:2x2
jax: 0.10.0
libtpu: 0.0.40
codegen_flags: <defaults>
</compile_context>

<pallas_src>
import functools
import numpy as np
import jax
import jax.numpy as jnp
from jax import lax
from jax.experimental import pallas as pl
from jax.experimental.pallas import tpu as pltpu


def causal_stack_kernel(x_ref, wk_ref, params_ref, o_ref, stack_ref,
                        *, T, C, K, L, B):
    """Fused CausalStack forward, all batches in one grid step.

    x_ref      : (B*T, 1)    f32  input, batch folded into rows.
    wk_ref     : (L, K*C, C) bf16 fused per-layer dilated-conv weights.
    params_ref : (4+L, C)    f32  rows = [w_in, b_in, w_out, b_out(bcast), bl_0..bl_{L-1}].
    o_ref      : (1, B*T)    f32  lane-dense output row.
    stack_ref  : (B*T, K*C)  bf16 VMEM scratch holding the K causally shifted taps.
    """
    BT = B * T
    x = x_ref[...]                             # (BT, 1)
    w_in = params_ref[0:1, :]                  # (1, C)
    b_in = params_ref[1:2, :]                  # (1, C)
    w_out = params_ref[2:3, :]                 # (1, C)
    b_out = params_ref[3:4, 0:1]               # (1, 1)

    # Input 1x1 conv + ReLU.  After this h >= 0 and stays >= 0 through the
    # residual stack (h += relu(...)), so the per-layer relu(h) and the final
    # relu(h) of the reference module are mathematical no-ops and are omitted.
    h = jnp.maximum(x * w_in + b_in, 0.0)      # (BT, C) f32

    # Time-within-batch index, computed once.  Used to (a) zero the causal
    # padding region and (b) kill the cross-batch leakage of the fused-row roll.
    t_idx = lax.broadcasted_iota(jnp.int32, (BT, C), 0) % T

    for l in range(L):
        dil = 2 ** l
        # Build the (BT, K*C) lane-stacked slab of the K causally shifted taps.
        for j in range(K):
            s = (K - 1 - j) * dil              # look-back of tap j
            if s == 0:
                tap = h
            elif s >= T:
                tap = jnp.zeros_like(h)
            else:
                rolled = pltpu.roll(h, shift=s, axis=0)          # sublane roll (XLU)
                tap = jnp.where(t_idx >= s, rolled, 0.0)         # causal zero-pad
            stack_ref[:, j * C:(j + 1) * C] = tap.astype(jnp.bfloat16)
        # One fused matmul per layer: (BT, K*C) @ (K*C, C), bf16 in / f32 acc.
        v = jnp.dot(stack_ref[...], wk_ref[l],
                    preferred_element_type=jnp.float32)          # (BT, C) f32
        v = v + params_ref[4 + l:5 + l, :]                       # + layer bias
        h = h + jnp.maximum(v, 0.0)                              # residual add

    # Output 1x1 conv (C -> 1) emitted as a lane-dense (1, BT) row:
    # contract the C axes of w_out and h (q·k^T-style dot_general).
    y = lax.dot_general(w_out, h, (((1,), (1,)), ((), ())),
                        preferred_element_type=jnp.float32)      # (1, BT)
    o_ref[...] = (y + b_out).astype(o_ref.dtype)


def causal_stack_forward(x_btc, w_in, b_in, wk, bl, w_out, b_out):
    """x_btc: (B, T, 1) f32.  Returns (B, T, 1) f32."""
    B, T, _ = x_btc.shape
    L, K, C, _ = wk.shape
    BT = B * T

    # Fold batch into the row (M) axis outside the kernel (free XLA reshape).
    x2 = x_btc.reshape(BT, 1)

    # Fuse the K taps of each layer into one (K*C, C) weight slab; bf16 weights
    # halve the weight DMA and cut MXU passes (accumulation stays f32).
    wk_fused = wk.reshape(L, K * C, C).astype(jnp.bfloat16)

    # Pack all small parameters into a single (4+L, C) array -> one DMA.
    params = jnp.concatenate(
        [w_in.reshape(1, C).astype(jnp.float32),
         b_in.reshape(1, C).astype(jnp.float32),
         w_out.reshape(1, C).astype(jnp.float32),
         jnp.broadcast_to(b_out.reshape(1, 1).astype(jnp.float32), (1, C)),
         bl.reshape(L, C).astype(jnp.float32)],
        axis=0)

    kernel = functools.partial(causal_stack_kernel, T=T, C=C, K=K, L=L, B=B)

    # Single grid step: at these sizes (<1 MFLOP) the kernel is step/DMA
    # overhead bound, so everything runs in one block.
    # NOTE: for large B on v7x one would instead grid over B with
    # dimension_semantics=("parallel",) to occupy both TensorCores; VMEM use
    # here is ~100 KiB so no vmem_limit tuning is needed on any generation.
    y_row = pl.pallas_call(
        kernel,
        out_shape=jax.ShapeDtypeStruct((1, BT), jnp.float32),
        grid=(1,),
        in_specs=[
            pl.BlockSpec((BT, 1), lambda i: (0, 0)),             # x (batch-folded)
            pl.BlockSpec((L, K * C, C), lambda i: (0, 0, 0)),    # fused conv weights
            pl.BlockSpec((4 + L, C), lambda i: (0, 0)),          # packed small params
        ],
        out_specs=pl.BlockSpec((1, BT), lambda i: (0, 0)),
        scratch_shapes=[pltpu.VMEM((BT, K * C), jnp.bfloat16)],
        compiler_params=pltpu.CompilerParams(
            dimension_semantics=("arbitrary",)),
    )(x2, wk_fused, params)

    return y_row.reshape(B, T, 1)


def reference_forward(x_btc, w_in, b_in, wk, bl, w_out, b_out):
    # Pure-JAX f32 reference mirroring the PyTorch module semantics.
    B, T, _ = x_btc.shape
    L, K, C, _ = wk.shape
    h = jnp.maximum(x_btc * w_in[None] + b_in[None], 0.0)        # (B, T, C)
    for l in range(L):
        dil = 2 ** l
        u = jnp.maximum(h, 0.0)
        v = jnp.zeros((B, T, C), jnp.float32) + bl[l][None]
        for j in range(K):
            s = (K - 1 - j) * dil
            if s == 0:
                us = u
            elif s >= T:
                us = jnp.zeros_like(u)
            else:
                us = jnp.pad(u, ((0, 0), (s, 0), (0, 0)))[:, :T, :]
            v = v + jnp.einsum('btc,cd->btd', us, wk[l, j])
        h = h + jnp.maximum(v, 0.0)
    hr = jnp.maximum(h, 0.0)
    return jnp.sum(hr * w_out[None], axis=-1, keepdims=True) + b_out[0, 0]


if __name__ == "__main__":
    # Small shapes consistent with the module: channels=32, kernel=3, n_layers=4.
    B, T, C, K, L = 2, 32, 32, 3, 4

    key = jax.random.PRNGKey(0)
    ks = jax.random.split(key, 7)
    x = jax.random.normal(ks[0], (B, T, 1), jnp.float32)              # PyTorch x: (B,1,T) NCW
    # inp: Conv1d(1, C, 1)  -> weight (C,1,1), bias (C,)
    w_in = 0.5 * jax.random.normal(ks[1], (1, C), jnp.float32)
    b_in = 0.1 * jax.random.normal(ks[2], (1, C), jnp.float32)
    # body: L layers of Conv1d(C, C, 3, dilation=2**l) -> weight (C,C,3), bias (C,)
    # stored as wk[l, j, c_in, c_out] == torch_weight_l[c_out, c_in, j]
    wk = (0.2 / np.sqrt(C)) * jax.random.normal(ks[3], (L, K, C, C), jnp.float32)
    bl = 0.1 * jax.random.normal(ks[4], (L, 1, C), jnp.float32)
    # out: Conv1d(C, 1, 1) -> weight (1,C,1), bias (1,)
    w_out = (0.5 / np.sqrt(C)) * jax.random.normal(ks[5], (1, C), jnp.float32)
    b_out = 0.1 * jax.random.normal(ks[6], (1, 1), jnp.float32)

    y_kernel = jax.block_until_ready(
        causal_stack_forward(x, w_in, b_in, wk, bl, w_out, b_out))
    y_ref = jax.block_until_ready(
        reference_forward(x, w_in, b_in, wk, bl, w_out, b_out))

    assert y_kernel.shape == (B, T, 1)
    # Tolerance accounts for the bf16 matmul inputs (f32 accumulation).
    np.testing.assert_allclose(np.asarray(y_kernel), np.asarray(y_ref),
                               rtol=2e-2, atol=2e-2)
    print("KERNEL_OK")
</pallas_src>

<mosaic_0001>
module attributes {stable_mosaic.version = 11 : i64} {
  func.func @causal_stack_kernel(%arg0: i32, %arg1: memref<64x1xf32, #tpu.memory_space<vmem>>, %arg2: memref<4x96x32xbf16, #tpu.memory_space<vmem>>, %arg3: memref<8x32xf32, #tpu.memory_space<vmem>>, %arg4: memref<1x64xf32, #tpu.memory_space<vmem>>, %arg5: memref<64x96xbf16, #tpu.memory_space<vmem>>) attributes {dimension_semantics = [#tpu.dimension_semantics<arbitrary>], iteration_bounds = array<i64: 1>, scalar_prefetch = 0 : i64, scratch_operands = 1 : i64, tpu.core_type = #tpu.core_type<tc>, window_params = [{pipeline_mode = #tpu.pipeline_mode<synchronous>, transform_indices = @transform_0, window_bounds = array<i64: 64, 1>}, {pipeline_mode = #tpu.pipeline_mode<synchronous>, transform_indices = @transform_1, window_bounds = array<i64: 4, 96, 32>}, {pipeline_mode = #tpu.pipeline_mode<synchronous>, transform_indices = @transform_2, window_bounds = array<i64: 8, 32>}, {pipeline_mode = #tpu.pipeline_mode<synchronous>, transform_indices = @transform_3, window_bounds = array<i64: 1, 64>}]} {
    %c0 = arith.constant 0 : index
    %c0_0 = arith.constant 0 : index
    %0 = vector.load %arg1[%c0, %c0_0] : memref<64x1xf32, #tpu.memory_space<vmem>>, vector<64x1xf32>
    %c0_1 = arith.constant 0 : index
    %c0_2 = arith.constant 0 : index
    %1 = vector.load %arg3[%c0_1, %c0_2] : memref<8x32xf32, #tpu.memory_space<vmem>>, vector<1x32xf32>
    %c1 = arith.constant 1 : index
    %c0_3 = arith.constant 0 : index
    %2 = vector.load %arg3[%c1, %c0_3] : memref<8x32xf32, #tpu.memory_space<vmem>>, vector<1x32xf32>
    %c2 = arith.constant 2 : index
    %c0_4 = arith.constant 0 : index
    %3 = vector.load %arg3[%c2, %c0_4] : memref<8x32xf32, #tpu.memory_space<vmem>>, vector<1x32xf32>
    %c3 = arith.constant 3 : index
    %c0_5 = arith.constant 0 : index
    %4 = vector.load %arg3[%c3, %c0_5] : memref<8x32xf32, #tpu.memory_space<vmem>>, vector<1x1xf32>
    %5 = vector.broadcast %0 : vector<64x1xf32> to vector<64x32xf32>
    %6 = vector.broadcast %1 : vector<1x32xf32> to vector<64x32xf32>
    %7 = arith.mulf %5, %6 : vector<64x32xf32>
    %8 = vector.broadcast %2 : vector<1x32xf32> to vector<64x32xf32>
    %9 = arith.addf %7, %8 : vector<64x32xf32>
    %cst = arith.constant 0.000000e+00 : f32
    %10 = vector.broadcast %cst : f32 to vector<64x32xf32>
    %11 = arith.maximumf %9, %10 : vector<64x32xf32>
    %12 = tpu.iota {dimensions = array<i32: 0>} : vector<64x32xi32>
    %c32_i32 = arith.constant 32 : i32
    %c0_i32 = arith.constant 0 : i32
    %13 = arith.cmpi eq, %c32_i32, %c0_i32 : i32
    %c1_i32 = arith.constant 1 : i32
    %14 = arith.select %13, %c1_i32, %c32_i32 : i32
    %15 = vector.broadcast %14 : i32 to vector<64x32xi32>
    %16 = arith.remsi %12, %15 : vector<64x32xi32>
    %c0_i32_6 = arith.constant 0 : i32
    %17 = vector.broadcast %c0_i32_6 : i32 to vector<64x32xi32>
    %18 = arith.cmpi ne, %16, %17 : vector<64x32xi32>
    %c0_i32_7 = arith.constant 0 : i32
    %19 = vector.broadcast %c0_i32_7 : i32 to vector<64x32xi32>
    %20 = arith.cmpi slt, %16, %19 : vector<64x32xi32>
    %c0_i32_8 = arith.constant 0 : i32
    %21 = arith.cmpi slt, %14, %c0_i32_8 : i32
    %22 = vector.broadcast %21 : i1 to vector<64x32xi1>
    %23 = vector.broadcast %22 : vector<64x32xi1> to vector<64x32xi1>
    %24 = arith.xori %20, %23 : vector<64x32xi1>
    %25 = arith.andi %24, %18 : vector<64x32xi1>
    %26 = vector.broadcast %14 : i32 to vector<64x32xi32>
    %27 = arith.addi %16, %26 : vector<64x32xi32>
    %28 = arith.select %25, %27, %16 : vector<64x32xi1>, vector<64x32xi32>
    %c2_i32 = arith.constant 2 : i32
    %29 = tpu.dynamic_rotate %11 by %c2_i32 dim 0 : vector<64x32xf32>, i32 -> vector<64x32xf32>
    %c2_i32_9 = arith.constant 2 : i32
    %30 = vector.broadcast %c2_i32_9 : i32 to vector<64x32xi32>
    %31 = arith.cmpi sge, %28, %30 : vector<64x32xi32>
    %cst_10 = arith.constant 0.000000e+00 : f32
    %32 = vector.broadcast %cst_10 : f32 to vector<64x32xf32>
    %33 = arith.select %31, %29, %32 : vector<64x32xi1>, vector<64x32xf32>
    %34 = arith.truncf %33 : vector<64x32xf32> to vector<64x32xbf16>
    %c0_11 = arith.constant 0 : index
    %c0_12 = arith.constant 0 : index
    %35 = vector.load %arg5[%c0_11, %c0_12] : memref<64x96xbf16, #tpu.memory_space<vmem>>, vector<64x32xbf16>
    tpu.vector_store %arg5[%c0_11, %c0_12], %34 {strides = array<i32>} : memref<64x96xbf16, #tpu.memory_space<vmem>>, vector<64x32xbf16>,
    %c1_i32_13 = arith.constant 1 : i32
    %36 = tpu.dynamic_rotate %11 by %c1_i32_13 dim 0 : vector<64x32xf32>, i32 -> vector<64x32xf32>
    %c1_i32_14 = arith.constant 1 : i32
    %37 = vector.broadcast %c1_i32_14 : i32 to vector<64x32xi32>
    %38 = arith.cmpi sge, %28, %37 : vector<64x32xi32>
    %cst_15 = arith.constant 0.000000e+00 : f32
    %39 = vector.broadcast %cst_15 : f32 to vector<64x32xf32>
    %40 = arith.select %38, %36, %39 : vector<64x32xi1>, vector<64x32xf32>
    %41 = arith.truncf %40 : vector<64x32xf32> to vector<64x32xbf16>
    %c0_16 = arith.constant 0 : index
    %c32 = arith.constant 32 : index
    %42 = vector.load %arg5[%c0_16, %c32] : memref<64x96xbf16, #tpu.memory_space<vmem>>, vector<64x32xbf16>
    tpu.vector_store %arg5[%c0_16, %c32], %41 {strides = array<i32>} : memref<64x96xbf16, #tpu.memory_space<vmem>>, vector<64x32xbf16>,
    %43 = arith.truncf %11 : vector<64x32xf32> to vector<64x32xbf16>
    %c0_17 = arith.constant 0 : index
    %c64 = arith.constant 64 : index
    %44 = vector.load %arg5[%c0_17, %c64] : memref<64x96xbf16, #tpu.memory_space<vmem>>, vector<64x32xbf16>
    tpu.vector_store %arg5[%c0_17, %c64], %43 {strides = array<i32>} : memref<64x96xbf16, #tpu.memory_space<vmem>>, vector<64x32xbf16>,
    %c0_18 = arith.constant 0 : index
    %c0_19 = arith.constant 0 : index
    %45 = vector.load %arg5[%c0_18, %c0_19] : memref<64x96xbf16, #tpu.memory_space<vmem>>, vector<64x96xbf16>
    %c0_20 = arith.constant 0 : index
    %c0_21 = arith.constant 0 : index
    %c0_22 = arith.constant 0 : index
    %46 = vector.load %arg2[%c0_20, %c0_21, %c0_22] : memref<4x96x32xbf16, #tpu.memory_space<vmem>>, vector<1x96x32xbf16>
    %47 = vector.shape_cast %46 : vector<1x96x32xbf16> to vector<96x32xbf16>
    %cst_23 = arith.constant dense<0.000000e+00> : vector<64x32xf32>
    %48 = tpu.matmul %45, %47, %cst_23 {dimension_numbers = #tpu.dot_dimension_numbers<[1], [0], [0], [1], [0, 0, 1, 1], [], []>} : vector<64x96xbf16>, vector<96x32xbf16>, vector<64x32xf32> -> vector<64x32xf32>
    %c4 = arith.constant 4 : index
    %c0_24 = arith.constant 0 : index
    %49 = vector.load %arg3[%c4, %c0_24] : memref<8x32xf32, #tpu.memory_space<vmem>>, vector<1x32xf32>
    %50 = vector.broadcast %49 : vector<1x32xf32> to vector<64x32xf32>
    %51 = arith.addf %48, %50 : vector<64x32xf32>
    %cst_25 = arith.constant 0.000000e+00 : f32
    %52 = vector.broadcast %cst_25 : f32 to vector<64x32xf32>
    %53 = arith.maximumf %51, %52 : vector<64x32xf32>
    %54 = arith.addf %11, %53 : vector<64x32xf32>
    %c4_i32 = arith.constant 4 : i32
    %55 = tpu.dynamic_rotate %54 by %c4_i32 dim 0 : vector<64x32xf32>, i32 -> vector<64x32xf32>
    %c4_i32_26 = arith.constant 4 : i32
    %56 = vector.broadcast %c4_i32_26 : i32 to vector<64x32xi32>
    %57 = arith.cmpi sge, %28, %56 : vector<64x32xi32>
    %cst_27 = arith.constant 0.000000e+00 : f32
    %58 = vector.broadcast %cst_27 : f32 to vector<64x32xf32>
    %59 = arith.select %57, %55, %58 : vector<64x32xi1>, vector<64x32xf32>
    %60 = arith.truncf %59 : vector<64x32xf32> to vector<64x32xbf16>
    %c0_28 = arith.constant 0 : index
    %c0_29 = arith.constant 0 : index
    %61 = vector.load %arg5[%c0_28, %c0_29] : memref<64x96xbf16, #tpu.memory_space<vmem>>, vector<64x32xbf16>
    tpu.vector_store %arg5[%c0_28, %c0_29], %60 {strides = array<i32>} : memref<64x96xbf16, #tpu.memory_space<vmem>>, vector<64x32xbf16>,
    %c2_i32_30 = arith.constant 2 : i32
    %62 = tpu.dynamic_rotate %54 by %c2_i32_30 dim 0 : vector<64x32xf32>, i32 -> vector<64x32xf32>
    %c2_i32_31 = arith.constant 2 : i32
    %63 = vector.broadcast %c2_i32_31 : i32 to vector<64x32xi32>
    %64 = arith.cmpi sge, %28, %63 : vector<64x32xi32>
    %cst_32 = arith.constant 0.000000e+00 : f32
    %65 = vector.broadcast %cst_32 : f32 to vector<64x32xf32>
    %66 = arith.select %64, %62, %65 : vector<64x32xi1>, vector<64x32xf32>
    %67 = arith.truncf %66 : vector<64x32xf32> to vector<64x32xbf16>
    %c0_33 = arith.constant 0 : index
    %c32_34 = arith.constant 32 : index
    %68 = vector.load %arg5[%c0_33, %c32_34] : memref<64x96xbf16, #tpu.memory_space<vmem>>, vector<64x32xbf16>
    tpu.vector_store %arg5[%c0_33, %c32_34], %67 {strides = array<i32>} : memref<64x96xbf16, #tpu.memory_space<vmem>>, vector<64x32xbf16>,
    %69 = arith.truncf %54 : vector<64x32xf32> to vector<64x32xbf16>
    %c0_35 = arith.constant 0 : index
    %c64_36 = arith.constant 64 : index
    %70 = vector.load %arg5[%c0_35, %c64_36] : memref<64x96xbf16, #tpu.memory_space<vmem>>, vector<64x32xbf16>
    tpu.vector_store %arg5[%c0_35, %c64_36], %69 {strides = array<i32>} : memref<64x96xbf16, #tpu.memory_space<vmem>>, vector<64x32xbf16>,
    %c0_37 = arith.constant 0 : index
    %c0_38 = arith.constant 0 : index
    %71 = vector.load %arg5[%c0_37, %c0_38] : memref<64x96xbf16, #tpu.memory_space<vmem>>, vector<64x96xbf16>
    %c1_39 = arith.constant 1 : index
    %c0_40 = arith.constant 0 : index
    %c0_41 = arith.constant 0 : index
    %72 = vector.load %arg2[%c1_39, %c0_40, %c0_41] : memref<4x96x32xbf16, #tpu.memory_space<vmem>>, vector<1x96x32xbf16>
    %73 = vector.shape_cast %72 : vector<1x96x32xbf16> to vector<96x32xbf16>
    %cst_42 = arith.constant dense<0.000000e+00> : vector<64x32xf32>
    %74 = tpu.matmul %71, %73, %cst_42 {dimension_numbers = #tpu.dot_dimension_numbers<[1], [0], [0], [1], [0, 0, 1, 1], [], []>} : vector<64x96xbf16>, vector<96x32xbf16>, vector<64x32xf32> -> vector<64x32xf32>
    %c5 = arith.constant 5 : index
    %c0_43 = arith.constant 0 : index
    %75 = vector.load %arg3[%c5, %c0_43] : memref<8x32xf32, #tpu.memory_space<vmem>>, vector<1x32xf32>
    %76 = vector.broadcast %75 : vector<1x32xf32> to vector<64x32xf32>
    %77 = arith.addf %74, %76 : vector<64x32xf32>
    %cst_44 = arith.constant 0.000000e+00 : f32
    %78 = vector.broadcast %cst_44 : f32 to vector<64x32xf32>
    %79 = arith.maximumf %77, %78 : vector<64x32xf32>
    %80 = arith.addf %54, %79 : vector<64x32xf32>
    %c8_i32 = arith.constant 8 : i32
    %81 = tpu.dynamic_rotate %80 by %c8_i32 dim 0 : vector<64x32xf32>, i32 -> vector<64x32xf32>
    %c8_i32_45 = arith.constant 8 : i32
    %82 = vector.broadcast %c8_i32_45 : i32 to vector<64x32xi32>
    %83 = arith.cmpi sge, %28, %82 : vector<64x32xi32>
    %cst_46 = arith.constant 0.000000e+00 : f32
    %84 = vector.broadcast %cst_46 : f32 to vector<64x32xf32>
    %85 = arith.select %83, %81, %84 : vector<64x32xi1>, vector<64x32xf32>
    %86 = arith.truncf %85 : vector<64x32xf32> to vector<64x32xbf16>
    %c0_47 = arith.constant 0 : index
    %c0_48 = arith.constant 0 : index
    %87 = vector.load %arg5[%c0_47, %c0_48] : memref<64x96xbf16, #tpu.memory_space<vmem>>, vector<64x32xbf16>
    tpu.vector_store %arg5[%c0_47, %c0_48], %86 {strides = array<i32>} : memref<64x96xbf16, #tpu.memory_space<vmem>>, vector<64x32xbf16>,
    %c4_i32_49 = arith.constant 4 : i32
    %88 = tpu.dynamic_rotate %80 by %c4_i32_49 dim 0 : vector<64x32xf32>, i32 -> vector<64x32xf32>
    %c4_i32_50 = arith.constant 4 : i32
    %89 = vector.broadcast %c4_i32_50 : i32 to vector<64x32xi32>
    %90 = arith.cmpi sge, %28, %89 : vector<64x32xi32>
    %cst_51 = arith.constant 0.000000e+00 : f32
    %91 = vector.broadcast %cst_51 : f32 to vector<64x32xf32>
    %92 = arith.select %90, %88, %91 : vector<64x32xi1>, vector<64x32xf32>
    %93 = arith.truncf %92 : vector<64x32xf32> to vector<64x32xbf16>
    %c0_52 = arith.constant 0 : index
    %c32_53 = arith.constant 32 : index
    %94 = vector.load %arg5[%c0_52, %c32_53] : memref<64x96xbf16, #tpu.memory_space<vmem>>, vector<64x32xbf16>
    tpu.vector_store %arg5[%c0_52, %c32_53], %93 {strides = array<i32>} : memref<64x96xbf16, #tpu.memory_space<vmem>>, vector<64x32xbf16>,
    %95 = arith.truncf %80 : vector<64x32xf32> to vector<64x32xbf16>
    %c0_54 = arith.constant 0 : index
    %c64_55 = arith.constant 64 : index
    %96 = vector.load %arg5[%c0_54, %c64_55] : memref<64x96xbf16, #tpu.memory_space<vmem>>, vector<64x32xbf16>
    tpu.vector_store %arg5[%c0_54, %c64_55], %95 {strides = array<i32>} : memref<64x96xbf16, #tpu.memory_space<vmem>>, vector<64x32xbf16>,
    %c0_56 = arith.constant 0 : index
    %c0_57 = arith.constant 0 : index
    %97 = vector.load %arg5[%c0_56, %c0_57] : memref<64x96xbf16, #tpu.memory_space<vmem>>, vector<64x96xbf16>
    %c2_58 = arith.constant 2 : index
    %c0_59 = arith.constant 0 : index
    %c0_60 = arith.constant 0 : index
    %98 = vector.load %arg2[%c2_58, %c0_59, %c0_60] : memref<4x96x32xbf16, #tpu.memory_space<vmem>>, vector<1x96x32xbf16>
    %99 = vector.shape_cast %98 : vector<1x96x32xbf16> to vector<96x32xbf16>
    %cst_61 = arith.constant dense<0.000000e+00> : vector<64x32xf32>
    %100 = tpu.matmul %97, %99, %cst_61 {dimension_numbers = #tpu.dot_dimension_numbers<[1], [0], [0], [1], [0, 0, 1, 1], [], []>} : vector<64x96xbf16>, vector<96x32xbf16>, vector<64x32xf32> -> vector<64x32xf32>
    %c6 = arith.constant 6 : index
    %c0_62 = arith.constant 0 : index
    %101 = vector.load %arg3[%c6, %c0_62] : memref<8x32xf32, #tpu.memory_space<vmem>>, vector<1x32xf32>
    %102 = vector.broadcast %101 : vector<1x32xf32> to vector<64x32xf32>
    %103 = arith.addf %100, %102 : vector<64x32xf32>
    %cst_63 = arith.constant 0.000000e+00 : f32
    %104 = vector.broadcast %cst_63 : f32 to vector<64x32xf32>
    %105 = arith.maximumf %103, %104 : vector<64x32xf32>
    %106 = arith.addf %80, %105 : vector<64x32xf32>
    %c16_i32 = arith.constant 16 : i32
    %107 = tpu.dynamic_rotate %106 by %c16_i32 dim 0 : vector<64x32xf32>, i32 -> vector<64x32xf32>
    %c16_i32_64 = arith.constant 16 : i32
    %108 = vector.broadcast %c16_i32_64 : i32 to vector<64x32xi32>
    %109 = arith.cmpi sge, %28, %108 : vector<64x32xi32>
    %cst_65 = arith.constant 0.000000e+00 : f32
    %110 = vector.broadcast %cst_65 : f32 to vector<64x32xf32>
    %111 = arith.select %109, %107, %110 : vector<64x32xi1>, vector<64x32xf32>
    %112 = arith.truncf %111 : vector<64x32xf32> to vector<64x32xbf16>
    %c0_66 = arith.constant 0 : index
    %c0_67 = arith.constant 0 : index
    %113 = vector.load %arg5[%c0_66, %c0_67] : memref<64x96xbf16, #tpu.memory_space<vmem>>, vector<64x32xbf16>
    tpu.vector_store %arg5[%c0_66, %c0_67], %112 {strides = array<i32>} : memref<64x96xbf16, #tpu.memory_space<vmem>>, vector<64x32xbf16>,
    %c8_i32_68 = arith.constant 8 : i32
    %114 = tpu.dynamic_rotate %106 by %c8_i32_68 dim 0 : vector<64x32xf32>, i32 -> vector<64x32xf32>
    %c8_i32_69 = arith.constant 8 : i32
    %115 = vector.broadcast %c8_i32_69 : i32 to vector<64x32xi32>
    %116 = arith.cmpi sge, %28, %115 : vector<64x32xi32>
    %cst_70 = arith.constant 0.000000e+00 : f32
    %117 = vector.broadcast %cst_70 : f32 to vector<64x32xf32>
    %118 = arith.select %116, %114, %117 : vector<64x32xi1>, vector<64x32xf32>
    %119 = arith.truncf %118 : vector<64x32xf32> to vector<64x32xbf16>
    %c0_71 = arith.constant 0 : index
    %c32_72 = arith.constant 32 : index
    %120 = vector.load %arg5[%c0_71, %c32_72] : memref<64x96xbf16, #tpu.memory_space<vmem>>, vector<64x32xbf16>
    tpu.vector_store %arg5[%c0_71, %c32_72], %119 {strides = array<i32>} : memref<64x96xbf16, #tpu.memory_space<vmem>>, vector<64x32xbf16>,
    %121 = arith.truncf %106 : vector<64x32xf32> to vector<64x32xbf16>
    %c0_73 = arith.constant 0 : index
    %c64_74 = arith.constant 64 : index
    %122 = vector.load %arg5[%c0_73, %c64_74] : memref<64x96xbf16, #tpu.memory_space<vmem>>, vector<64x32xbf16>
    tpu.vector_store %arg5[%c0_73, %c64_74], %121 {strides = array<i32>} : memref<64x96xbf16, #tpu.memory_space<vmem>>, vector<64x32xbf16>,
    %c0_75 = arith.constant 0 : index
    %c0_76 = arith.constant 0 : index
    %123 = vector.load %arg5[%c0_75, %c0_76] : memref<64x96xbf16, #tpu.memory_space<vmem>>, vector<64x96xbf16>
    %c3_77 = arith.constant 3 : index
    %c0_78 = arith.constant 0 : index
    %c0_79 = arith.constant 0 : index
    %124 = vector.load %arg2[%c3_77, %c0_78, %c0_79] : memref<4x96x32xbf16, #tpu.memory_space<vmem>>, vector<1x96x32xbf16>
    %125 = vector.shape_cast %124 : vector<1x96x32xbf16> to vector<96x32xbf16>
    %cst_80 = arith.constant dense<0.000000e+00> : vector<64x32xf32>
    %126 = tpu.matmul %123, %125, %cst_80 {dimension_numbers = #tpu.dot_dimension_numbers<[1], [0], [0], [1], [0, 0, 1, 1], [], []>} : vector<64x96xbf16>, vector<96x32xbf16>, vector<64x32xf32> -> vector<64x32xf32>
    %c7 = arith.constant 7 : index
    %c0_81 = arith.constant 0 : index
    %127 = vector.load %arg3[%c7, %c0_81] : memref<8x32xf32, #tpu.memory_space<vmem>>, vector<1x32xf32>
    %128 = vector.broadcast %127 : vector<1x32xf32> to vector<64x32xf32>
    %129 = arith.addf %126, %128 : vector<64x32xf32>
    %cst_82 = arith.constant 0.000000e+00 : f32
    %130 = vector.broadcast %cst_82 : f32 to vector<64x32xf32>
    %131 = arith.maximumf %129, %130 : vector<64x32xf32>
    %132 = arith.addf %106, %131 : vector<64x32xf32>
    %cst_83 = arith.constant dense<0.000000e+00> : vector<1x64xf32>
    %133 = tpu.matmul %3, %132, %cst_83 {dimension_numbers = #tpu.dot_dimension_numbers<[1], [1], [0], [0], [0, 0, 1, 0], [], []>} : vector<1x32xf32>, vector<64x32xf32>, vector<1x64xf32> -> vector<1x64xf32>
    %134 = vector.broadcast %4 : vector<1x1xf32> to vector<1x64xf32>
    %135 = arith.addf %133, %134 : vector<1x64xf32>
    %c0_84 = arith.constant 0 : index
    %c0_85 = arith.constant 0 : index
    %136 = vector.load %arg4[%c0_84, %c0_85] : memref<1x64xf32, #tpu.memory_space<vmem>>, vector<1x64xf32>
    tpu.vector_store %arg4[%c0_84, %c0_85], %135 {strides = array<i32>} : memref<1x64xf32, #tpu.memory_space<vmem>>, vector<1x64xf32>,
    return
  }
  func.func @transform_0(%arg0: i32) -> (i32, i32) {
    %c0_i32 = arith.constant 0 : i32
    %c0_i32_0 = arith.constant 0 : i32
    %c0_i32_1 = arith.constant 0 : i32
    return %c0_i32, %c0_i32_0 : i32, i32
  }
  func.func @transform_1(%arg0: i32) -> (i32, i32, i32) {
    %c0_i32 = arith.constant 0 : i32
    %c0_i32_0 = arith.constant 0 : i32
    %c0_i32_1 = arith.constant 0 : i32
    %c0_i32_2 = arith.constant 0 : i32
    return %c0_i32, %c0_i32_0, %c0_i32_1 : i32, i32, i32
  }
  func.func @transform_2(%arg0: i32) -> (i32, i32) {
    %c0_i32 = arith.constant 0 : i32
    %c0_i32_0 = arith.constant 0 : i32
    %c0_i32_1 = arith.constant 0 : i32
    return %c0_i32, %c0_i32_0 : i32, i32
  }
  func.func @transform_3(%arg0: i32) -> (i32, i32) {
    %c0_i32 = arith.constant 0 : i32
    %c0_i32_0 = arith.constant 0 : i32
    %c0_i32_1 = arith.constant 0 : i32
    return %c0_i32, %c0_i32_0 : i32, i32
  }
}

</mosaic_0001>

<llo_original>
// kernel: tpu_custom_call.1
$region0: #{tpu_custom_call.1}
  #allocation0 [shape = 'u32[]', space=smem, size = 0x4, offset = 0x4, fixed_abs, tag = 'smem constant byte address 0x4 - core index']
  #allocation1 [shape = 'u32[72,128]{1,0:T(1,128)}', space=vmem, size = 0x9000, scoped, tag = 'internal scratch']
  #allocation2 [shape = 'bf16[64,96]{1,0:T(8,128)(2,1)}', space=vmem, size = 0x4000, scoped, tag = 'scratch operand']
  %s0 = inlined_call_operand.vmem [shape: f32[64,1], index: 0, kind: input, shape index: {}]
  %s1 = inlined_call_operand.vmem [shape: bf16[4,96,32], index: 1, kind: input, shape index: {}]
  %s2 = inlined_call_operand.vmem [shape: f32[8,32], index: 2, kind: input, shape index: {}]
  %s3 = inlined_call_operand.hbm [shape: f32[1,64], index: 3, kind: output, shape index: {}]
  %s4 = sld [smem:[#allocation0]]
  $region22: #{tpu_custom_call.1} parent=0
    _
  %s6 = ssub.s32 1, %s4
  %s7 = scalar_select 0, %s6, %s4
  $region1: #{tpu_custom_call.1} parent=0
    #allocation3 [shape = 'u8[512]{0}', space=vmem, size = 0x400, scoped, tag = 'output window, operand 0, single buffered']
    #allocation4 [shape = 's32[1]{0}', space=sflag, size = 0x4, scoped, tag = 'scoped memory for tpu_custom_call.1']
    %8 = vsyncpa [#allocation4], 0
    // Predicated region
    $region2: #{tpu_custom_call.1} parent=1 // pred_check
      _
    $region3: #{tpu_custom_call.1} parent=1 // pred_check_branch
      %10 = sbr.rel (0) target = $region5
    $region4: #{tpu_custom_call.1} parent=1 // pred_region
      _
    $region5: #{tpu_custom_call.1} parent=1 // pred_fallthru
      _
    // Predicated region
    $region6: #{tpu_custom_call.1} parent=1 // pred_check
      _
    $region7: #{tpu_custom_call.1} parent=1 // pred_check_branch
      %12 = sbr.rel (0) target = $region9
    $region8: #{tpu_custom_call.1} parent=1 // pred_region
      _
    $region9: #{tpu_custom_call.1} parent=1 // pred_fallthru
      _
    // Predicated region
    $region10: #{tpu_custom_call.1} parent=1 // pred_check
      _
    $region11: #{tpu_custom_call.1} parent=1 // pred_check_branch
      %14 = sbr.rel (0) target = $region13
    $region12: #{tpu_custom_call.1} parent=1 // pred_region
      _
    $region13: #{tpu_custom_call.1} parent=1 // pred_fallthru
      _
    %v16 = vld [vmem:[%s0] sm:$0xff]
    %v17 = vld [vmem:[%s0 + $0x8] sm:$0xff]
    %v18 = vld [vmem:[%s0 + $0x10] sm:$0xff]
    %v19 = vld [vmem:[%s0 + $0x18] sm:$0xff]
    %v20 = vld [vmem:[%s0 + $0x20] sm:$0xff]
    %v21 = vld [vmem:[%s0 + $0x28] sm:$0xff]
    %v22 = vld [vmem:[%s0 + $0x30] sm:$0xff]
    %v23 = vld [vmem:[%s0 + $0x38] sm:$0xff]
    %v24 = vld [vmem:[%s2] sm:$0x1]
    %v25 = vld [vmem:[%s2 + $0x1] sm:$0x1]
    %v26 = vld [vmem:[%s2 + $0x2] sm:$0x1]
    %v27 = vld [vmem:[%s2 + $0x3] sm:$0x1]
    %29 = vset.pattern.permute.xlu0 0
    %30 = vperm.xlu0 %29, %v16
    %v31 = vpop.permute.xlu0 %30
    %34 = vset.pattern.permute.xlu0 0
    %35 = vperm.xlu0 %34, %v17
    %v36 = vpop.permute.xlu0 %35
    %39 = vset.pattern.permute.xlu0 0
    %40 = vperm.xlu0 %39, %v18
    %v41 = vpop.permute.xlu0 %40
    %44 = vset.pattern.permute.xlu0 0
    %45 = vperm.xlu0 %44, %v19
    %v46 = vpop.permute.xlu0 %45
    %49 = vset.pattern.permute.xlu0 0
    %50 = vperm.xlu0 %49, %v20
    %v51 = vpop.permute.xlu0 %50
    %54 = vset.pattern.permute.xlu0 0
    %55 = vperm.xlu0 %54, %v21
    %v56 = vpop.permute.xlu0 %55
    %59 = vset.pattern.permute.xlu0 0
    %60 = vperm.xlu0 %59, %v22
    %v61 = vpop.permute.xlu0 %60
    %64 = vset.pattern.permute.xlu0 0
    %65 = vperm.xlu0 %64, %v23
    %v66 = vpop.permute.xlu0 %65
    %v68 = vperm.slane %v24, 0
    %v69 = vmul.f32 %v31, %v68
    %v70 = vmul.f32 %v36, %v68
    %v71 = vmul.f32 %v41, %v68
    %v72 = vmul.f32 %v46, %v68
    %v73 = vmul.f32 %v51, %v68
    %v74 = vmul.f32 %v56, %v68
    %v75 = vmul.f32 %v61, %v68
    %v76 = vmul.f32 %v66, %v68
    %v77 = vperm.slane %v25, 0
    %v78 = vadd.f32 %v69, %v77
    %v79 = vadd.f32 %v70, %v77
    %v80 = vadd.f32 %v71, %v77
    %v81 = vadd.f32 %v72, %v77
    %v82 = vadd.f32 %v73, %v77
    %v83 = vadd.f32 %v74, %v77
    %v84 = vadd.f32 %v75, %v77
    %v85 = vadd.f32 %v76, %v77
    %v86 = vmax.f32 %v78, 0.0
    %v87 = vmax.f32 %v79, 0.0
    %v88 = vmax.f32 %v80, 0.0
    %v89 = vmax.f32 %v81, 0.0
    %v90 = vmax.f32 %v82, 0.0
    %v91 = vmax.f32 %v83, 0.0
    %v92 = vmax.f32 %v84, 0.0
    %v93 = vmax.f32 %v85, 0.0
    %v94 = vlaneseq
    %v95 = vshrl.u32 %v94, 7
    %v96 = vadd.s32 %v95, 8
    %v97 = vadd.s32 %v95, 16
    %v98 = vadd.s32 %v95, 24
    %v99 = vadd.s32 %v95, 32
    %v100 = vadd.s32 %v95, 40
    %v101 = vadd.s32 %v95, 48
    %v102 = vadd.s32 %v95, 56
    %vm103 = vcmp.lt.s32.totalorder %v95, 0
    %v104 = vsub.s32 0, %v95
    %v105 = vsel %vm103, %v104, %v95
    %v106 = vshrl.u32 %v105, 5
    %v107 = vand.u32 %v105, 31
    %v108 = vsub.s32 0, %v107
    %v109 = vsel %vm103, %v108, %v107
    %vm110 = vcmp.lt.s32.totalorder %v96, 0
    %v111 = vsub.s32 0, %v96
    %v112 = vsel %vm110, %v111, %v96
    %v113 = vshrl.u32 %v112, 5
    %v114 = vand.u32 %v112, 31
    %v115 = vsub.s32 0, %v114
    %v116 = vsel %vm110, %v115, %v114
    %vm117 = vcmp.lt.s32.totalorder %v97, 0
    %v118 = vsub.s32 0, %v97
    %v119 = vsel %vm117, %v118, %v97
    %v120 = vshrl.u32 %v119, 5
    %v121 = vand.u32 %v119, 31
    %v122 = vsub.s32 0, %v121
    %v123 = vsel %vm117, %v122, %v121
    %vm124 = vcmp.lt.s32.totalorder %v98, 0
    %v125 = vsub.s32 0, %v98
    %v126 = vsel %vm124, %v125, %v98
    %v127 = vshrl.u32 %v126, 5
    %v128 = vand.u32 %v126, 31
    %v129 = vsub.s32 0, %v128
    %v130 = vsel %vm124, %v129, %v128
    %vm131 = vcmp.lt.s32.totalorder %v99, 0
    %v132 = vsub.s32 0, %v99
    %v133 = vsel %vm131, %v132, %v99
    %v134 = vshrl.u32 %v133, 5
    %v135 = vand.u32 %v133, 31
    %v136 = vsub.s32 0, %v135
    %v137 = vsel %vm131, %v136, %v135
    %vm138 = vcmp.lt.s32.totalorder %v100, 0
    %v139 = vsub.s32 0, %v100
    %v140 = vsel %vm138, %v139, %v100
    %v141 = vshrl.u32 %v140, 5
    %v142 = vand.u32 %v140, 31
    %v143 = vsub.s32 0, %v142
    %v144 = vsel %vm138, %v143, %v142
    %vm145 = vcmp.lt.s32.totalorder %v101, 0
    %v146 = vsub.s32 0, %v101
    %v147 = vsel %vm145, %v146, %v101
    %v148 = vshrl.u32 %v147, 5
    %v149 = vand.u32 %v147, 31
    %v150 = vsub.s32 0, %v149
    %v151 = vsel %vm145, %v150, %v149
    %vm152 = vcmp.lt.s32.totalorder %v102, 0
    %v153 = vsub.s32 0, %v102
    %v154 = vsel %vm152, %v153, %v102
    %v155 = vshrl.u32 %v154, 5
    %v156 = vand.u32 %v154, 31
    %v157 = vsub.s32 0, %v156
    %v158 = vsel %vm152, %v157, %v156
    %vm159 = vcmp.ne.s32.totalorder %v109, 0
    %vm160 = vcmp.ne.s32.totalorder %v116, 0
    %vm161 = vcmp.ne.s32.totalorder %v123, 0
    %vm162 = vcmp.ne.s32.totalorder %v130, 0
    %vm163 = vcmp.ne.s32.totalorder %v137, 0
    %vm164 = vcmp.ne.s32.totalorder %v144, 0
    %vm165 = vcmp.ne.s32.totalorder %v151, 0
    %vm166 = vcmp.ne.s32.totalorder %v158, 0
    %vm167 = vcmp.lt.s32.totalorder %v109, 0
    %vm168 = vcmp.lt.s32.totalorder %v116, 0
    %vm169 = vcmp.lt.s32.totalorder %v123, 0
    %vm170 = vcmp.lt.s32.totalorder %v130, 0
    %vm171 = vcmp.lt.s32.totalorder %v137, 0
    %vm172 = vcmp.lt.s32.totalorder %v144, 0
    %vm173 = vcmp.lt.s32.totalorder %v151, 0
    %vm174 = vcmp.lt.s32.totalorder %v158, 0
    %vm175 = vmand %vm167, %vm159
    %vm176 = vmand %vm168, %vm160
    %vm177 = vmand %vm169, %vm161
    %vm178 = vmand %vm170, %vm162
    %vm179 = vmand %vm171, %vm163
    %vm180 = vmand %vm172, %vm164
    %vm181 = vmand %vm173, %vm165
    %vm182 = vmand %vm174, %vm166
    %v183 = vadd.s32 %v109, 32
    %v184 = vadd.s32 %v116, 32
    %v185 = vadd.s32 %v123, 32
    %v186 = vadd.s32 %v130, 32
    %v187 = vadd.s32 %v137, 32
    %v188 = vadd.s32 %v144, 32
    %v189 = vadd.s32 %v151, 32
    %v190 = vadd.s32 %v158, 32
    %v191 = vsel %vm175, %v183, %v109
    %v192 = vsel %vm176, %v184, %v116
    %v193 = vsel %vm177, %v185, %v123
    %v194 = vsel %vm178, %v186, %v130
    %v195 = vsel %vm179, %v187, %v137
    %v196 = vsel %vm180, %v188, %v144
    %v197 = vsel %vm181, %v189, %v151
    %v198 = vsel %vm182, %v190, %v158
    %v199 = vrot.slane %v86, 6
    %v200 = vrot.slane %v87, 6
    %v201 = vrot.slane %v88, 6
    %v202 = vrot.slane %v89, 6
    %v203 = vrot.slane %v90, 6
    %v204 = vrot.slane %v91, 6
    %v205 = vrot.slane %v92, 6
    %v206 = vrot.slane %v93, 6
    %vm207 = vcmp.lt.s32.totalorder %v95, 2
    %v208 = vsel %vm207, %v205, %v206
    %v209 = vsel %vm207, %v204, %v205
    %v210 = vsel %vm207, %v203, %v204
    %v211 = vsel %vm207, %v202, %v203
    %v212 = vsel %vm207, %v201, %v202
    %v213 = vsel %vm207, %v200, %v201
    %v214 = vsel %vm207, %v199, %v200
    %v215 = vsel %vm207, %v206, %v199
    %vm216 = vcmp.ge.s32.totalorder %v191, 2
    %vm217 = vcmp.ge.s32.totalorder %v192, 2
    %vm218 = vcmp.ge.s32.totalorder %v193, 2
    %vm219 = vcmp.ge.s32.totalorder %v194, 2
    %vm220 = vcmp.ge.s32.totalorder %v195, 2
    %vm221 = vcmp.ge.s32.totalorder %v196, 2
    %vm222 = vcmp.ge.s32.totalorder %v197, 2
    %vm223 = vcmp.ge.s32.totalorder %v198, 2
    %v224 = vsel %vm216, %v215, 0.0
    %v225 = vsel %vm217, %v214, 0.0
    %v226 = vsel %vm218, %v213, 0.0
    %v227 = vsel %vm219, %v212, 0.0
    %v228 = vsel %vm220, %v211, 0.0
    %v229 = vsel %vm221, %v210, 0.0
    %v230 = vsel %vm222, %v209, 0.0
    %v231 = vsel %vm223, %v208, 0.0
    %v232 = vpack.c.bf16 %v224, %v224
    %v233 = vpack.c.bf16 %v225, %v225
    %v234 = vpack.c.bf16 %v226, %v226
    %v235 = vpack.c.bf16 %v227, %v227
    %v236 = vpack.c.bf16 %v228, %v228
    %v237 = vpack.c.bf16 %v229, %v229
    %v238 = vpack.c.bf16 %v230, %v230
    %v239 = vpack.c.bf16 %v231, %v231
    %vm240 = vcmask 257024
    %241 = vst.msk [vmem:[#allocation2] sm:$0xf] %vm240, %v232
    %242 = vst.msk [vmem:[#allocation2 + $0x4] sm:$0xf] %vm240, %v233
    %243 = vst.msk [vmem:[#allocation2 + $0x8] sm:$0xf] %vm240, %v234
    %244 = vst.msk [vmem:[#allocation2 + $0xc] sm:$0xf] %vm240, %v235
    %245 = vst.msk [vmem:[#allocation2 + $0x10] sm:$0xf] %vm240, %v236
    %246 = vst.msk [vmem:[#allocation2 + $0x14] sm:$0xf] %vm240, %v237
    %247 = vst.msk [vmem:[#allocation2 + $0x18] sm:$0xf] %vm240, %v238
    %248 = vst.msk [vmem:[#allocation2 + $0x1c] sm:$0xf] %vm240, %v239
    %v249 = vrot.slane %v86, 7
    %v250 = vrot.slane %v87, 7
    %v251 = vrot.slane %v88, 7
    %v252 = vrot.slane %v89, 7
    %v253 = vrot.slane %v90, 7
    %v254 = vrot.slane %v91, 7
    %v255 = vrot.slane %v92, 7
    %v256 = vrot.slane %v93, 7
    %vm257 = vcmp.lt.s32.totalorder %v95, 1
    %v258 = vsel %vm257, %v255, %v256
    %v259 = vsel %vm257, %v254, %v255
    %v260 = vsel %vm257, %v253, %v254
    %v261 = vsel %vm257, %v252, %v253
    %v262 = vsel %vm257, %v251, %v252
    %v263 = vsel %vm257, %v250, %v251
    %v264 = vsel %vm257, %v249, %v250
    %v265 = vsel %vm257, %v256, %v249
    %vm266 = vcmp.ge.s32.totalorder %v191, 1
    %vm267 = vcmp.ge.s32.totalorder %v192, 1
    %vm268 = vcmp.ge.s32.totalorder %v193, 1
    %vm269 = vcmp.ge.s32.totalorder %v194, 1
    %vm270 = vcmp.ge.s32.totalorder %v195, 1
    %vm271 = vcmp.ge.s32.totalorder %v196, 1
    %vm272 = vcmp.ge.s32.totalorder %v197, 1
    %vm273 = vcmp.ge.s32.totalorder %v198, 1
    %v274 = vsel %vm266, %v265, 0.0
    %v275 = vsel %vm267, %v264, 0.0
    %v276 = vsel %vm268, %v263, 0.0
    %v277 = vsel %vm269, %v262, 0.0
    %v278 = vsel %vm270, %v261, 0.0
    %v279 = vsel %vm271, %v260, 0.0
    %v280 = vsel %vm272, %v259, 0.0
    %v281 = vsel %vm273, %v258, 0.0
    %v282 = vpack.c.bf16 %v274, %v274
    %v283 = vpack.c.bf16 %v275, %v275
    %v284 = vpack.c.bf16 %v276, %v276
    %v285 = vpack.c.bf16 %v277, %v277
    %v286 = vpack.c.bf16 %v278, %v278
    %v287 = vpack.c.bf16 %v279, %v279
    %v288 = vpack.c.bf16 %v280, %v280
    %v289 = vpack.c.bf16 %v281, %v281
    %298 = vrot.lane.b32.xlu0 %v282, 32
    %v299 = vpop.permute.xlu0 %298
    %300 = vrot.lane.b32.xlu0 %v283, 32
    %v301 = vpop.permute.xlu0 %300
    %302 = vrot.lane.b32.xlu0 %v284, 32
    %v303 = vpop.permute.xlu0 %302
    %304 = vrot.lane.b32.xlu0 %v285, 32
    %v305 = vpop.permute.xlu0 %304
    %306 = vrot.lane.b32.xlu0 %v286, 32
    %v307 = vpop.permute.xlu0 %306
    %308 = vrot.lane.b32.xlu0 %v287, 32
    %v309 = vpop.permute.xlu0 %308
    %310 = vrot.lane.b32.xlu0 %v288, 32
    %v311 = vpop.permute.xlu0 %310
    %312 = vrot.lane.b32.xlu0 %v289, 32
    %v313 = vpop.permute.xlu0 %312
    %vm322 = vcmask 519424
    %323 = vst.msk [vmem:[#allocation2] sm:$0xf] %vm322, %v299
    %324 = vst.msk [vmem:[#allocation2 + $0x4] sm:$0xf] %vm322, %v301
    %325 = vst.msk [vmem:[#allocation2 + $0x8] sm:$0xf] %vm322, %v303
    %326 = vst.msk [vmem:[#allocation2 + $0xc] sm:$0xf] %vm322, %v305
    %327 = vst.msk [vmem:[#allocation2 + $0x10] sm:$0xf] %vm322, %v307
    %328 = vst.msk [vmem:[#allocation2 + $0x14] sm:$0xf] %vm322, %v309
    %329 = vst.msk [vmem:[#allocation2 + $0x18] sm:$0xf] %vm322, %v311
    %330 = vst.msk [vmem:[#allocation2 + $0x1c] sm:$0xf] %vm322, %v313
    %v331 = vpack.c.bf16 %v86, %v86
    %v332 = vpack.c.bf16 %v87, %v87
    %v333 = vpack.c.bf16 %v88, %v88
    %v334 = vpack.c.bf16 %v89, %v89
    %v335 = vpack.c.bf16 %v90, %v90
    %v336 = vpack.c.bf16 %v91, %v91
    %v337 = vpack.c.bf16 %v92, %v92
    %v338 = vpack.c.bf16 %v93, %v93
    %347 = vrot.lane.b32.xlu0 %v331, 64
    %v348 = vpop.permute.xlu0 %347
    %349 = vrot.lane.b32.xlu0 %v332, 64
    %v350 = vpop.permute.xlu0 %349
    %351 = vrot.lane.b32.xlu0 %v333, 64
    %v352 = vpop.permute.xlu0 %351
    %353 = vrot.lane.b32.xlu0 %v334, 64
    %v354 = vpop.permute.xlu0 %353
    %355 = vrot.lane.b32.xlu0 %v335, 64
    %v356 = vpop.permute.xlu0 %355
    %357 = vrot.lane.b32.xlu0 %v336, 64
    %v358 = vpop.permute.xlu0 %357
    %359 = vrot.lane.b32.xlu0 %v337, 64
    %v360 = vpop.permute.xlu0 %359
    %361 = vrot.lane.b32.xlu0 %v338, 64
    %v362 = vpop.permute.xlu0 %361
    %vm371 = vcmask 781824
    %372 = vst.msk [vmem:[#allocation2] sm:$0xf] %vm371, %v348
    %373 = vst.msk [vmem:[#allocation2 + $0x4] sm:$0xf] %vm371, %v350
    %374 = vst.msk [vmem:[#allocation2 + $0x8] sm:$0xf] %vm371, %v352
    %375 = vst.msk [vmem:[#allocation2 + $0xc] sm:$0xf] %vm371, %v354
    %376 = vst.msk [vmem:[#allocation2 + $0x10] sm:$0xf] %vm371, %v356
    %377 = vst.msk [vmem:[#allocation2 + $0x14] sm:$0xf] %vm371, %v358
    %378 = vst.msk [vmem:[#allocation2 + $0x18] sm:$0xf] %vm371, %v360
    %379 = vst.msk [vmem:[#allocation2 + $0x1c] sm:$0xf] %vm371, %v362
    %v380 = vld [vmem:[#allocation2] sm:$0xf]
    %v381 = vld [vmem:[#allocation2 + $0x4] sm:$0xf]
    %v382 = vld [vmem:[#allocation2 + $0x8] sm:$0xf]
    %v383 = vld [vmem:[#allocation2 + $0xc] sm:$0xf]
    %v384 = vld [vmem:[#allocation2 + $0x10] sm:$0xf]
    %v385 = vld [vmem:[#allocation2 + $0x14] sm:$0xf]
    %v386 = vld [vmem:[#allocation2 + $0x18] sm:$0xf]
    %v387 = vld [vmem:[#allocation2 + $0x1c] sm:$0xf]
    %v388 = vld [vmem:[%s1] sm:$0xf]
    %v389 = vld [vmem:[%s1 + $0x4] sm:$0xf]
    %v390 = vld [vmem:[%s1 + $0x8] sm:$0xf]
    %v391 = vld [vmem:[%s1 + $0xc] sm:$0xf]
    %v392 = vld [vmem:[%s1 + $0x10] sm:$0xf]
    %v393 = vld [vmem:[%s1 + $0x14] sm:$0xf]
    %v394 = vld [vmem:[%s1 + $0x18] sm:$0xf]
    %v395 = vld [vmem:[%s1 + $0x1c] sm:$0xf]
    %v396 = vld [vmem:[%s1 + $0x20] sm:$0xf]
    %v397 = vld [vmem:[%s1 + $0x24] sm:$0xf]
    %v398 = vld [vmem:[%s1 + $0x28] sm:$0xf]
    %v399 = vld [vmem:[%s1 + $0x2c] sm:$0xf]
    %v400 = vld [vmem:[%s2 + $0x4] sm:$0x1]
    %v401 = vperm.slane %v400, 0
    %v410 = vunpack.c.l.b16 %v380
    %v411 = vunpack.c.l.b16 %v381
    %v412 = vunpack.c.l.b16 %v382
    %v413 = vunpack.c.l.b16 %v383
    %v414 = vunpack.c.l.b16 %v384
    %v415 = vunpack.c.l.b16 %v385
    %v416 = vunpack.c.l.b16 %v386
    %v417 = vunpack.c.l.b16 %v387
    %v418 = vpack.c.b16 %v411, %v410
    %v419 = vpack.c.b16 %v413, %v412
    %v420 = vpack.c.b16 %v415, %v414
    %v421 = vpack.c.b16 %v417, %v416
    %v434 = vunpack.c.l.b16 %v388
    %v435 = vunpack.c.l.b16 %v389
    %v436 = vunpack.c.l.b16 %v390
    %v437 = vunpack.c.l.b16 %v391
    %v438 = vunpack.c.l.b16 %v392
    %v439 = vunpack.c.l.b16 %v393
    %v440 = vunpack.c.l.b16 %v394
    %v441 = vunpack.c.l.b16 %v395
    %v442 = vunpack.c.l.b16 %v396
    %v443 = vunpack.c.l.b16 %v397
    %v444 = vunpack.c.l.b16 %v398
    %v445 = vunpack.c.l.b16 %v399
    %v446 = vpack.c.b16 %v435, %v434
    %v447 = vpack.c.b16 %v437, %v436
    %v448 = vpack.c.b16 %v439, %v438
    %v449 = vpack.c.b16 %v441, %v440
    %v450 = vpack.c.b16 %v443, %v442
    %v451 = vpack.c.b16 %v445, %v444
    %vm458 = vcmask 785408
    %v460 = vsel %vm458, %v418, 0
    %v463 = vsel %vm458, %v419, 0
    %v466 = vsel %vm458, %v420, 0
    %v469 = vsel %vm458, %v421, 0
    %471 = vmatpush.bf16.msra.mxu0 0
    %472 = vmatpush.bf16.msra.mxu0 0
    %473 = vmatpush.bf16.msra.mxu0 %v451
    %474 = vmatpush.bf16.msra.mxu0 %v450
    %475 = vmatpush.bf16.msra.mxu0 %v449
    %476 = vmatpush.bf16.msra.mxu0 %v448
    %477 = vmatpush.bf16.msra.mxu0 %v447
    %478 = vmatpush.bf16.msra.mxu0 %v446
    %479 = vmatmul.bf16.gmra.mxu0 %v460
    %v480 = vpop.f32.mrf.mxu0
    %v481 = vadd.f32 %v401, %v480
    %v482 = vpop.f32.mrf.mxu0
    %v483 = vadd.f32 %v401, %v482
    %484 = vmatmul.bf16.gmra.mxu0 %v463
    %v485 = vpop.f32.mrf.mxu0
    %v486 = vadd.f32 %v401, %v485
    %v487 = vpop.f32.mrf.mxu0
    %v488 = vadd.f32 %v401, %v487
    %489 = vmatmul.bf16.gmra.mxu0 %v466
    %v490 = vpop.f32.mrf.mxu0
    %v491 = vadd.f32 %v401, %v490
    %v492 = vpop.f32.mrf.mxu0
    %v493 = vadd.f32 %v401, %v492
    %494 = vmatmul.bf16.gmra.mxu0 %v469
    %v495 = vpop.f32.mrf.mxu0
    %v496 = vadd.f32 %v401, %v495
    %v497 = vpop.f32.mrf.mxu0
    %v498 = vadd.f32 %v401, %v497
    %499 = vdwg.mxu0
    %v500 = vmax.f32 %v481, 0.0
    %v501 = vmax.f32 %v483, 0.0
    %v502 = vmax.f32 %v486, 0.0
    %v503 = vmax.f32 %v488, 0.0
    %v504 = vmax.f32 %v491, 0.0
    %v505 = vmax.f32 %v493, 0.0
    %v506 = vmax.f32 %v496, 0.0
    %v507 = vmax.f32 %v498, 0.0
    %v508 = vadd.f32 %v86, %v500
    %v509 = vadd.f32 %v87, %v501
    %v510 = vadd.f32 %v88, %v502
    %v511 = vadd.f32 %v89, %v503
    %v512 = vadd.f32 %v90, %v504
    %v513 = vadd.f32 %v91, %v505
    %v514 = vadd.f32 %v92, %v506
    %v515 = vadd.f32 %v93, %v507
    %v516 = vrot.slane %v508, 4
    %v517 = vrot.slane %v509, 4
    %v518 = vrot.slane %v510, 4
    %v519 = vrot.slane %v511, 4
    %v520 = vrot.slane %v512, 4
    %v521 = vrot.slane %v513, 4
    %v522 = vrot.slane %v514, 4
    %v523 = vrot.slane %v515, 4
    %vm524 = vcmp.lt.s32.totalorder %v95, 4
    %v525 = vsel %vm524, %v522, %v523
    %v526 = vsel %vm524, %v521, %v522
    %v527 = vsel %vm524, %v520, %v521
    %v528 = vsel %vm524, %v519, %v520
    %v529 = vsel %vm524, %v518, %v519
    %v530 = vsel %vm524, %v517, %v518
    %v531 = vsel %vm524, %v516, %v517
    %v532 = vsel %vm524, %v523, %v516
    %vm533 = vcmp.ge.s32.totalorder %v191, 4
    %vm534 = vcmp.ge.s32.totalorder %v192, 4
    %vm535 = vcmp.ge.s32.totalorder %v193, 4
    %vm536 = vcmp.ge.s32.totalorder %v194, 4
    %vm537 = vcmp.ge.s32.totalorder %v195, 4
    %vm538 = vcmp.ge.s32.totalorder %v196, 4
    %vm539 = vcmp.ge.s32.totalorder %v197, 4
    %vm540 = vcmp.ge.s32.totalorder %v198, 4
    %v541 = vsel %vm533, %v532, 0.0
    %v542 = vsel %vm534, %v531, 0.0
    %v543 = vsel %vm535, %v530, 0.0
    %v544 = vsel %vm536, %v529, 0.0
    %v545 = vsel %vm537, %v528, 0.0
    %v546 = vsel %vm538, %v527, 0.0
    %v547 = vsel %vm539, %v526, 0.0
    %v548 = vsel %vm540, %v525, 0.0
    %v549 = vpack.c.bf16 %v541, %v541
    %v550 = vpack.c.bf16 %v542, %v542
    %v551 = vpack.c.bf16 %v543, %v543
    %v552 = vpack.c.bf16 %v544, %v544
    %v553 = vpack.c.bf16 %v545, %v545
    %v554 = vpack.c.bf16 %v546, %v546
    %v555 = vpack.c.bf16 %v547, %v547
    %v556 = vpack.c.bf16 %v548, %v548
    %557 = vst.msk [vmem:[#allocation2] sm:$0xf] %vm240, %v549
    %558 = vst.msk [vmem:[#allocation2 + $0x4] sm:$0xf] %vm240, %v550
    %559 = vst.msk [vmem:[#allocation2 + $0x8] sm:$0xf] %vm240, %v551
    %560 = vst.msk [vmem:[#allocation2 + $0xc] sm:$0xf] %vm240, %v552
    %561 = vst.msk [vmem:[#allocation2 + $0x10] sm:$0xf] %vm240, %v553
    %562 = vst.msk [vmem:[#allocation2 + $0x14] sm:$0xf] %vm240, %v554
    %563 = vst.msk [vmem:[#allocation2 + $0x18] sm:$0xf] %vm240, %v555
    %564 = vst.msk [vmem:[#allocation2 + $0x1c] sm:$0xf] %vm240, %v556
    %v565 = vrot.slane %v508, 6
    %v566 = vrot.slane %v509, 6
    %v567 = vrot.slane %v510, 6
    %v568 = vrot.slane %v511, 6
    %v569 = vrot.slane %v512, 6
    %v570 = vrot.slane %v513, 6
    %v571 = vrot.slane %v514, 6
    %v572 = vrot.slane %v515, 6
    %v573 = vsel %vm207, %v571, %v572
    %v574 = vsel %vm207, %v570, %v571
    %v575 = vsel %vm207, %v569, %v570
    %v576 = vsel %vm207, %v568, %v569
    %v577 = vsel %vm207, %v567, %v568
    %v578 = vsel %vm207, %v566, %v567
    %v579 = vsel %vm207, %v565, %v566
    %v580 = vsel %vm207, %v572, %v565
    %v581 = vsel %vm216, %v580, 0.0
    %v582 = vsel %vm217, %v579, 0.0
    %v583 = vsel %vm218, %v578, 0.0
    %v584 = vsel %vm219, %v577, 0.0
    %v585 = vsel %vm220, %v576, 0.0
    %v586 = vsel %vm221, %v575, 0.0
    %v587 = vsel %vm222, %v574, 0.0
    %v588 = vsel %vm223, %v573, 0.0
    %v589 = vpack.c.bf16 %v581, %v581
    %v590 = vpack.c.bf16 %v582, %v582
    %v591 = vpack.c.bf16 %v583, %v583
    %v592 = vpack.c.bf16 %v584, %v584
    %v593 = vpack.c.bf16 %v585, %v585
    %v594 = vpack.c.bf16 %v586, %v586
    %v595 = vpack.c.bf16 %v587, %v587
    %v596 = vpack.c.bf16 %v588, %v588
    %605 = vrot.lane.b32.xlu0 %v589, 32
    %v606 = vpop.permute.xlu0 %605
    %607 = vrot.lane.b32.xlu0 %v590, 32
    %v608 = vpop.permute.xlu0 %607
    %609 = vrot.lane.b32.xlu0 %v591, 32
    %v610 = vpop.permute.xlu0 %609
    %611 = vrot.lane.b32.xlu0 %v592, 32
    %v612 = vpop.permute.xlu0 %611
    %613 = vrot.lane.b32.xlu0 %v593, 32
    %v614 = vpop.permute.xlu0 %613
    %615 = vrot.lane.b32.xlu0 %v594, 32
    %v616 = vpop.permute.xlu0 %615
    %617 = vrot.lane.b32.xlu0 %v595, 32
    %v618 = vpop.permute.xlu0 %617
    %619 = vrot.lane.b32.xlu0 %v596, 32
    %v620 = vpop.permute.xlu0 %619
    %629 = vst.msk [vmem:[#allocation2] sm:$0xf] %vm322, %v606
    %630 = vst.msk [vmem:[#allocation2 + $0x4] sm:$0xf] %vm322, %v608
    %631 = vst.msk [vmem:[#allocation2 + $0x8] sm:$0xf] %vm322, %v610
    %632 = vst.msk [vmem:[#allocation2 + $0xc] sm:$0xf] %vm322, %v612
    %633 = vst.msk [vmem:[#allocation2 + $0x10] sm:$0xf] %vm322, %v614
    %634 = vst.msk [vmem:[#allocation2 + $0x14] sm:$0xf] %vm322, %v616
    %635 = vst.msk [vmem:[#allocation2 + $0x18] sm:$0xf] %vm322, %v618
    %636 = vst.msk [vmem:[#allocation2 + $0x1c] sm:$0xf] %vm322, %v620
    %v637 = vpack.c.bf16 %v508, %v508
    %v638 = vpack.c.bf16 %v509, %v509
    %v639 = vpack.c.bf16 %v510, %v510
    %v640 = vpack.c.bf16 %v511, %v511
    %v641 = vpack.c.bf16 %v512, %v512
    %v642 = vpack.c.bf16 %v513, %v513
    %v643 = vpack.c.bf16 %v514, %v514
    %v644 = vpack.c.bf16 %v515, %v515
    %653 = vrot.lane.b32.xlu0 %v637, 64
    %v654 = vpop.permute.xlu0 %653
    %655 = vrot.lane.b32.xlu0 %v638, 64
    %v656 = vpop.permute.xlu0 %655
    %657 = vrot.lane.b32.xlu0 %v639, 64
    %v658 = vpop.permute.xlu0 %657
    %659 = vrot.lane.b32.xlu0 %v640, 64
    %v660 = vpop.permute.xlu0 %659
    %661 = vrot.lane.b32.xlu0 %v641, 64
    %v662 = vpop.permute.xlu0 %661
    %663 = vrot.lane.b32.xlu0 %v642, 64
    %v664 = vpop.permute.xlu0 %663
    %665 = vrot.lane.b32.xlu0 %v643, 64
    %v666 = vpop.permute.xlu0 %665
    %667 = vrot.lane.b32.xlu0 %v644, 64
    %v668 = vpop.permute.xlu0 %667
    %677 = vst.msk [vmem:[#allocation2] sm:$0xf] %vm371, %v654
    %678 = vst.msk [vmem:[#allocation2 + $0x4] sm:$0xf] %vm371, %v656
    %679 = vst.msk [vmem:[#allocation2 + $0x8] sm:$0xf] %vm371, %v658
    %680 = vst.msk [vmem:[#allocation2 + $0xc] sm:$0xf] %vm371, %v660
    %681 = vst.msk [vmem:[#allocation2 + $0x10] sm:$0xf] %vm371, %v662
    %682 = vst.msk [vmem:[#allocation2 + $0x14] sm:$0xf] %vm371, %v664
    %683 = vst.msk [vmem:[#allocation2 + $0x18] sm:$0xf] %vm371, %v666
    %684 = vst.msk [vmem:[#allocation2 + $0x1c] sm:$0xf] %vm371, %v668
    %v685 = vld [vmem:[#allocation2] sm:$0xf]
    %v686 = vld [vmem:[#allocation2 + $0x4] sm:$0xf]
    %v687 = vld [vmem:[#allocation2 + $0x8] sm:$0xf]
    %v688 = vld [vmem:[#allocation2 + $0xc] sm:$0xf]
    %v689 = vld [vmem:[#allocation2 + $0x10] sm:$0xf]
    %v690 = vld [vmem:[#allocation2 + $0x14] sm:$0xf]
    %v691 = vld [vmem:[#allocation2 + $0x18] sm:$0xf]
    %v692 = vld [vmem:[#allocation2 + $0x1c] sm:$0xf]
    %s693 = scalar_lea.vmem %s1, 48
    %v694 = vld [vmem:[%s693] sm:$0xf]
    %v695 = vld [vmem:[%s693 + $0x4] sm:$0xf]
    %v696 = vld [vmem:[%s693 + $0x8] sm:$0xf]
    %v697 = vld [vmem:[%s693 + $0xc] sm:$0xf]
    %v698 = vld [vmem:[%s693 + $0x10] sm:$0xf]
    %v699 = vld [vmem:[%s693 + $0x14] sm:$0xf]
    %v700 = vld [vmem:[%s693 + $0x18] sm:$0xf]
    %v701 = vld [vmem:[%s693 + $0x1c] sm:$0xf]
    %v702 = vld [vmem:[%s693 + $0x20] sm:$0xf]
    %v703 = vld [vmem:[%s693 + $0x24] sm:$0xf]
    %v704 = vld [vmem:[%s693 + $0x28] sm:$0xf]
    %v705 = vld [vmem:[%s693 + $0x2c] sm:$0xf]
    %v706 = vld [vmem:[%s2 + $0x5] sm:$0x1]
    %v707 = vperm.slane %v706, 0
    %v716 = vunpack.c.l.b16 %v685
    %v717 = vunpack.c.l.b16 %v686
    %v718 = vunpack.c.l.b16 %v687
    %v719 = vunpack.c.l.b16 %v688
    %v720 = vunpack.c.l.b16 %v689
    %v721 = vunpack.c.l.b16 %v690
    %v722 = vunpack.c.l.b16 %v691
    %v723 = vunpack.c.l.b16 %v692
    %v724 = vpack.c.b16 %v717, %v716
    %v725 = vpack.c.b16 %v719, %v718
    %v726 = vpack.c.b16 %v721, %v720
    %v727 = vpack.c.b16 %v723, %v722
    %v740 = vunpack.c.l.b16 %v694
    %v741 = vunpack.c.l.b16 %v695
    %v742 = vunpack.c.l.b16 %v696
    %v743 = vunpack.c.l.b16 %v697
    %v744 = vunpack.c.l.b16 %v698
    %v745 = vunpack.c.l.b16 %v699
    %v746 = vunpack.c.l.b16 %v700
    %v747 = vunpack.c.l.b16 %v701
    %v748 = vunpack.c.l.b16 %v702
    %v749 = vunpack.c.l.b16 %v703
    %v750 = vunpack.c.l.b16 %v704
    %v751 = vunpack.c.l.b16 %v705
    %v752 = vpack.c.b16 %v741, %v740
    %v753 = vpack.c.b16 %v743, %v742
    %v754 = vpack.c.b16 %v745, %v744
    %v755 = vpack.c.b16 %v747, %v746
    %v756 = vpack.c.b16 %v749, %v748
    %v757 = vpack.c.b16 %v751, %v750
    %v765 = vsel %vm458, %v724, 0
    %v768 = vsel %vm458, %v725, 0
    %v771 = vsel %vm458, %v726, 0
    %v774 = vsel %vm458, %v727, 0
    %776 = vmatpush.bf16.msra.mxu0 0
    %777 = vmatpush.bf16.msra.mxu0 0
    %778 = vmatpush.bf16.msra.mxu0 %v757
    %779 = vmatpush.bf16.msra.mxu0 %v756
    %780 = vmatpush.bf16.msra.mxu0 %v755
    %781 = vmatpush.bf16.msra.mxu0 %v754
    %782 = vmatpush.bf16.msra.mxu0 %v753
    %783 = vmatpush.bf16.msra.mxu0 %v752
    %784 = vmatmul.bf16.gmra.mxu0 %v765
    %v785 = vpop.f32.mrf.mxu0
    %v786 = vadd.f32 %v707, %v785
    %v787 = vpop.f32.mrf.mxu0
    %v788 = vadd.f32 %v707, %v787
    %789 = vmatmul.bf16.gmra.mxu0 %v768
    %v790 = vpop.f32.mrf.mxu0
    %v791 = vadd.f32 %v707, %v790
    %v792 = vpop.f32.mrf.mxu0
    %v793 = vadd.f32 %v707, %v792
    %794 = vmatmul.bf16.gmra.mxu0 %v771
    %v795 = vpop.f32.mrf.mxu0
    %v796 = vadd.f32 %v707, %v795
    %v797 = vpop.f32.mrf.mxu0
    %v798 = vadd.f32 %v707, %v797
    %799 = vmatmul.bf16.gmra.mxu0 %v774
    %v800 = vpop.f32.mrf.mxu0
    %v801 = vadd.f32 %v707, %v800
    %v802 = vpop.f32.mrf.mxu0
    %v803 = vadd.f32 %v707, %v802
    %804 = vdwg.mxu0
    %v805 = vmax.f32 %v786, 0.0
    %v806 = vmax.f32 %v788, 0.0
    %v807 = vmax.f32 %v791, 0.0
    %v808 = vmax.f32 %v793, 0.0
    %v809 = vmax.f32 %v796, 0.0
    %v810 = vmax.f32 %v798, 0.0
    %v811 = vmax.f32 %v801, 0.0
    %v812 = vmax.f32 %v803, 0.0
    %v813 = vadd.f32 %v508, %v805
    %v814 = vadd.f32 %v509, %v806
    %v815 = vadd.f32 %v510, %v807
    %v816 = vadd.f32 %v511, %v808
    %v817 = vadd.f32 %v512, %v809
    %v818 = vadd.f32 %v513, %v810
    %v819 = vadd.f32 %v514, %v811
    %v820 = vadd.f32 %v515, %v812
    %vm821 = vcmp.ge.s32.totalorder %v191, 8
    %vm822 = vcmp.ge.s32.totalorder %v192, 8
    %vm823 = vcmp.ge.s32.totalorder %v193, 8
    %vm824 = vcmp.ge.s32.totalorder %v194, 8
    %vm825 = vcmp.ge.s32.totalorder %v195, 8
    %vm826 = vcmp.ge.s32.totalorder %v196, 8
    %vm827 = vcmp.ge.s32.totalorder %v197, 8
    %vm828 = vcmp.ge.s32.totalorder %v198, 8
    %v829 = vsel %vm821, %v820, 0.0
    %v830 = vsel %vm822, %v813, 0.0
    %v831 = vsel %vm823, %v814, 0.0
    %v832 = vsel %vm824, %v815, 0.0
    %v833 = vsel %vm825, %v816, 0.0
    %v834 = vsel %vm826, %v817, 0.0
    %v835 = vsel %vm827, %v818, 0.0
    %v836 = vsel %vm828, %v819, 0.0
    %v837 = vpack.c.bf16 %v829, %v829
    %v838 = vpack.c.bf16 %v830, %v830
    %v839 = vpack.c.bf16 %v831, %v831
    %v840 = vpack.c.bf16 %v832, %v832
    %v841 = vpack.c.bf16 %v833, %v833
    %v842 = vpack.c.bf16 %v834, %v834
    %v843 = vpack.c.bf16 %v835, %v835
    %v844 = vpack.c.bf16 %v836, %v836
    %845 = vst.msk [vmem:[#allocation2] sm:$0xf] %vm240, %v837
    %846 = vst.msk [vmem:[#allocation2 + $0x4] sm:$0xf] %vm240, %v838
    %847 = vst.msk [vmem:[#allocation2 + $0x8] sm:$0xf] %vm240, %v839
    %848 = vst.msk [vmem:[#allocation2 + $0xc] sm:$0xf] %vm240, %v840
    %849 = vst.msk [vmem:[#allocation2 + $0x10] sm:$0xf] %vm240, %v841
    %850 = vst.msk [vmem:[#allocation2 + $0x14] sm:$0xf] %vm240, %v842
    %851 = vst.msk [vmem:[#allocation2 + $0x18] sm:$0xf] %vm240, %v843
    %852 = vst.msk [vmem:[#allocation2 + $0x1c] sm:$0xf] %vm240, %v844
    %v853 = vrot.slane %v813, 4
    %v854 = vrot.slane %v814, 4
    %v855 = vrot.slane %v815, 4
    %v856 = vrot.slane %v816, 4
    %v857 = vrot.slane %v817, 4
    %v858 = vrot.slane %v818, 4
    %v859 = vrot.slane %v819, 4
    %v860 = vrot.slane %v820, 4
    %v861 = vsel %vm524, %v859, %v860
    %v862 = vsel %vm524, %v858, %v859
    %v863 = vsel %vm524, %v857, %v858
    %v864 = vsel %vm524, %v856, %v857
    %v865 = vsel %vm524, %v855, %v856
    %v866 = vsel %vm524, %v854, %v855
    %v867 = vsel %vm524, %v853, %v854
    %v868 = vsel %vm524, %v860, %v853
    %v869 = vsel %vm533, %v868, 0.0
    %v870 = vsel %vm534, %v867, 0.0
    %v871 = vsel %vm535, %v866, 0.0
    %v872 = vsel %vm536, %v865, 0.0
    %v873 = vsel %vm537, %v864, 0.0
    %v874 = vsel %vm538, %v863, 0.0
    %v875 = vsel %vm539, %v862, 0.0
    %v876 = vsel %vm540, %v861, 0.0
    %v877 = vpack.c.bf16 %v869, %v869
    %v878 = vpack.c.bf16 %v870, %v870
    %v879 = vpack.c.bf16 %v871, %v871
    %v880 = vpack.c.bf16 %v872, %v872
    %v881 = vpack.c.bf16 %v873, %v873
    %v882 = vpack.c.bf16 %v874, %v874
    %v883 = vpack.c.bf16 %v875, %v875
    %v884 = vpack.c.bf16 %v876, %v876
    %893 = vrot.lane.b32.xlu0 %v877, 32
    %v894 = vpop.permute.xlu0 %893
    %895 = vrot.lane.b32.xlu0 %v878, 32
    %v896 = vpop.permute.xlu0 %895
    %897 = vrot.lane.b32.xlu0 %v879, 32
    %v898 = vpop.permute.xlu0 %897
    %899 = vrot.lane.b32.xlu0 %v880, 32
    %v900 = vpop.permute.xlu0 %899
    %901 = vrot.lane.b32.xlu0 %v881, 32
    %v902 = vpop.permute.xlu0 %901
    %903 = vrot.lane.b32.xlu0 %v882, 32
    %v904 = vpop.permute.xlu0 %903
    %905 = vrot.lane.b32.xlu0 %v883, 32
    %v906 = vpop.permute.xlu0 %905
    %907 = vrot.lane.b32.xlu0 %v884, 32
    %v908 = vpop.permute.xlu0 %907
    %917 = vst.msk [vmem:[#allocation2] sm:$0xf] %vm322, %v894
    %918 = vst.msk [vmem:[#allocation2 + $0x4] sm:$0xf] %vm322, %v896
    %919 = vst.msk [vmem:[#allocation2 + $0x8] sm:$0xf] %vm322, %v898
    %920 = vst.msk [vmem:[#allocation2 + $0xc] sm:$0xf] %vm322, %v900
    %921 = vst.msk [vmem:[#allocation2 + $0x10] sm:$0xf] %vm322, %v902
    %922 = vst.msk [vmem:[#allocation2 + $0x14] sm:$0xf] %vm322, %v904
    %923 = vst.msk [vmem:[#allocation2 + $0x18] sm:$0xf] %vm322, %v906
    %924 = vst.msk [vmem:[#allocation2 + $0x1c] sm:$0xf] %vm322, %v908
    %v925 = vpack.c.bf16 %v813, %v813
    %v926 = vpack.c.bf16 %v814, %v814
    %v927 = vpack.c.bf16 %v815, %v815
    %v928 = vpack.c.bf16 %v816, %v816
    %v929 = vpack.c.bf16 %v817, %v817
    %v930 = vpack.c.bf16 %v818, %v818
    %v931 = vpack.c.bf16 %v819, %v819
    %v932 = vpack.c.bf16 %v820, %v820
    %941 = vrot.lane.b32.xlu0 %v925, 64
    %v942 = vpop.permute.xlu0 %941
    %943 = vrot.lane.b32.xlu0 %v926, 64
    %v944 = vpop.permute.xlu0 %943
    %945 = vrot.lane.b32.xlu0 %v927, 64
    %v946 = vpop.permute.xlu0 %945
    %947 = vrot.lane.b32.xlu0 %v928, 64
    %v948 = vpop.permute.xlu0 %947
    %949 = vrot.lane.b32.xlu0 %v929, 64
    %v950 = vpop.permute.xlu0 %949
    %951 = vrot.lane.b32.xlu0 %v930, 64
    %v952 = vpop.permute.xlu0 %951
    %953 = vrot.lane.b32.xlu0 %v931, 64
    %v954 = vpop.permute.xlu0 %953
    %955 = vrot.lane.b32.xlu0 %v932, 64
    %v956 = vpop.permute.xlu0 %955
    %965 = vst.msk [vmem:[#allocation2] sm:$0xf] %vm371, %v942
    %966 = vst.msk [vmem:[#allocation2 + $0x4] sm:$0xf] %vm371, %v944
    %967 = vst.msk [vmem:[#allocation2 + $0x8] sm:$0xf] %vm371, %v946
    %968 = vst.msk [vmem:[#allocation2 + $0xc] sm:$0xf] %vm371, %v948
    %969 = vst.msk [vmem:[#allocation2 + $0x10] sm:$0xf] %vm371, %v950
    %970 = vst.msk [vmem:[#allocation2 + $0x14] sm:$0xf] %vm371, %v952
    %971 = vst.msk [vmem:[#allocation2 + $0x18] sm:$0xf] %vm371, %v954
    %972 = vst.msk [vmem:[#allocation2 + $0x1c] sm:$0xf] %vm371, %v956
    %v973 = vld [vmem:[#allocation2] sm:$0xf]
    %v974 = vld [vmem:[#allocation2 + $0x4] sm:$0xf]
    %v975 = vld [vmem:[#allocation2 + $0x8] sm:$0xf]
    %v976 = vld [vmem:[#allocation2 + $0xc] sm:$0xf]
    %v977 = vld [vmem:[#allocation2 + $0x10] sm:$0xf]
    %v978 = vld [vmem:[#allocation2 + $0x14] sm:$0xf]
    %v979 = vld [vmem:[#allocation2 + $0x18] sm:$0xf]
    %v980 = vld [vmem:[#allocation2 + $0x1c] sm:$0xf]
    %s981 = scalar_lea.vmem %s1, 96
    %v982 = vld [vmem:[%s981] sm:$0xf]
    %v983 = vld [vmem:[%s981 + $0x4] sm:$0xf]
    %v984 = vld [vmem:[%s981 + $0x8] sm:$0xf]
    %v985 = vld [vmem:[%s981 + $0xc] sm:$0xf]
    %v986 = vld [vmem:[%s981 + $0x10] sm:$0xf]
    %v987 = vld [vmem:[%s981 + $0x14] sm:$0xf]
    %v988 = vld [vmem:[%s981 + $0x18] sm:$0xf]
    %v989 = vld [vmem:[%s981 + $0x1c] sm:$0xf]
    %v990 = vld [vmem:[%s981 + $0x20] sm:$0xf]
    %v991 = vld [vmem:[%s981 + $0x24] sm:$0xf]
    %v992 = vld [vmem:[%s981 + $0x28] sm:$0xf]
    %v993 = vld [vmem:[%s981 + $0x2c] sm:$0xf]
    %v994 = vld [vmem:[%s2 + $0x6] sm:$0x1]
    %v995 = vperm.slane %v994, 0
    %v1004 = vunpack.c.l.b16 %v973
    %v1005 = vunpack.c.l.b16 %v974
    %v1006 = vunpack.c.l.b16 %v975
    %v1007 = vunpack.c.l.b16 %v976
    %v1008 = vunpack.c.l.b16 %v977
    %v1009 = vunpack.c.l.b16 %v978
    %v1010 = vunpack.c.l.b16 %v979
    %v1011 = vunpack.c.l.b16 %v980
    %v1012 = vpack.c.b16 %v1005, %v1004
    %v1013 = vpack.c.b16 %v1007, %v1006
    %v1014 = vpack.c.b16 %v1009, %v1008
    %v1015 = vpack.c.b16 %v1011, %v1010
    %v1028 = vunpack.c.l.b16 %v982
    %v1029 = vunpack.c.l.b16 %v983
    %v1030 = vunpack.c.l.b16 %v984
    %v1031 = vunpack.c.l.b16 %v985
    %v1032 = vunpack.c.l.b16 %v986
    %v1033 = vunpack.c.l.b16 %v987
    %v1034 = vunpack.c.l.b16 %v988
    %v1035 = vunpack.c.l.b16 %v989
    %v1036 = vunpack.c.l.b16 %v990
    %v1037 = vunpack.c.l.b16 %v991
    %v1038 = vunpack.c.l.b16 %v992
    %v1039 = vunpack.c.l.b16 %v993
    %v1040 = vpack.c.b16 %v1029, %v1028
    %v1041 = vpack.c.b16 %v1031, %v1030
    %v1042 = vpack.c.b16 %v1033, %v1032
    %v1043 = vpack.c.b16 %v1035, %v1034
    %v1044 = vpack.c.b16 %v1037, %v1036
    %v1045 = vpack.c.b16 %v1039, %v1038
    %v1053 = vsel %vm458, %v1012, 0
    %v1056 = vsel %vm458, %v1013, 0
    %v1059 = vsel %vm458, %v1014, 0
    %v1062 = vsel %vm458, %v1015, 0
    %1064 = vmatpush.bf16.msra.mxu0 0
    %1065 = vmatpush.bf16.msra.mxu0 0
    %1066 = vmatpush.bf16.msra.mxu0 %v1045
    %1067 = vmatpush.bf16.msra.mxu0 %v1044
    %1068 = vmatpush.bf16.msra.mxu0 %v1043
    %1069 = vmatpush.bf16.msra.mxu0 %v1042
    %1070 = vmatpush.bf16.msra.mxu0 %v1041
    %1071 = vmatpush.bf16.msra.mxu0 %v1040
    %1072 = vmatmul.bf16.gmra.mxu0 %v1053
    %v1073 = vpop.f32.mrf.mxu0
    %v1074 = vadd.f32 %v995, %v1073
    %v1075 = vpop.f32.mrf.mxu0
    %v1076 = vadd.f32 %v995, %v1075
    %1077 = vmatmul.bf16.gmra.mxu0 %v1056
    %v1078 = vpop.f32.mrf.mxu0
    %v1079 = vadd.f32 %v995, %v1078
    %v1080 = vpop.f32.mrf.mxu0
    %v1081 = vadd.f32 %v995, %v1080
    %1082 = vmatmul.bf16.gmra.mxu0 %v1059
    %v1083 = vpop.f32.mrf.mxu0
    %v1084 = vadd.f32 %v995, %v1083
    %v1085 = vpop.f32.mrf.mxu0
    %v1086 = vadd.f32 %v995, %v1085
    %1087 = vmatmul.bf16.gmra.mxu0 %v1062
    %v1088 = vpop.f32.mrf.mxu0
    %v1089 = vadd.f32 %v995, %v1088
    %v1090 = vpop.f32.mrf.mxu0
    %v1091 = vadd.f32 %v995, %v1090
    %1092 = vdwg.mxu0
    %v1093 = vmax.f32 %v1074, 0.0
    %v1094 = vmax.f32 %v1076, 0.0
    %v1095 = vmax.f32 %v1079, 0.0
    %v1096 = vmax.f32 %v1081, 0.0
    %v1097 = vmax.f32 %v1084, 0.0
    %v1098 = vmax.f32 %v1086, 0.0
    %v1099 = vmax.f32 %v1089, 0.0
    %v1100 = vmax.f32 %v1091, 0.0
    %v1101 = vadd.f32 %v813, %v1093
    %v1102 = vadd.f32 %v814, %v1094
    %v1103 = vadd.f32 %v815, %v1095
    %v1104 = vadd.f32 %v816, %v1096
    %v1105 = vadd.f32 %v817, %v1097
    %v1106 = vadd.f32 %v818, %v1098
    %v1107 = vadd.f32 %v819, %v1099
    %v1108 = vadd.f32 %v820, %v1100
    %vm1109 = vcmp.ge.s32.totalorder %v191, 16
    %vm1110 = vcmp.ge.s32.totalorder %v192, 16
    %vm1111 = vcmp.ge.s32.totalorder %v193, 16
    %vm1112 = vcmp.ge.s32.totalorder %v194, 16
    %vm1113 = vcmp.ge.s32.totalorder %v195, 16
    %vm1114 = vcmp.ge.s32.totalorder %v196, 16
    %vm1115 = vcmp.ge.s32.totalorder %v197, 16
    %vm1116 = vcmp.ge.s32.totalorder %v198, 16
    %v1117 = vsel %vm1109, %v1107, 0.0
    %v1118 = vsel %vm1110, %v1108, 0.0
    %v1119 = vsel %vm1111, %v1101, 0.0
    %v1120 = vsel %vm1112, %v1102, 0.0
    %v1121 = vsel %vm1113, %v1103, 0.0
    %v1122 = vsel %vm1114, %v1104, 0.0
    %v1123 = vsel %vm1115, %v1105, 0.0
    %v1124 = vsel %vm1116, %v1106, 0.0
    %v1125 = vpack.c.bf16 %v1117, %v1117
    %v1126 = vpack.c.bf16 %v1118, %v1118
    %v1127 = vpack.c.bf16 %v1119, %v1119
    %v1128 = vpack.c.bf16 %v1120, %v1120
    %v1129 = vpack.c.bf16 %v1121, %v1121
    %v1130 = vpack.c.bf16 %v1122, %v1122
    %v1131 = vpack.c.bf16 %v1123, %v1123
    %v1132 = vpack.c.bf16 %v1124, %v1124
    %1133 = vst.msk [vmem:[#allocation2] sm:$0xf] %vm240, %v1125
    %1134 = vst.msk [vmem:[#allocation2 + $0x4] sm:$0xf] %vm240, %v1126
    %1135 = vst.msk [vmem:[#allocation2 + $0x8] sm:$0xf] %vm240, %v1127
    %1136 = vst.msk [vmem:[#allocation2 + $0xc] sm:$0xf] %vm240, %v1128
    %1137 = vst.msk [vmem:[#allocation2 + $0x10] sm:$0xf] %vm240, %v1129
    %1138 = vst.msk [vmem:[#allocation2 + $0x14] sm:$0xf] %vm240, %v1130
    %1139 = vst.msk [vmem:[#allocation2 + $0x18] sm:$0xf] %vm240, %v1131
    %1140 = vst.msk [vmem:[#allocation2 + $0x1c] sm:$0xf] %vm240, %v1132
    %v1141 = vsel %vm821, %v1108, 0.0
    %v1142 = vsel %vm822, %v1101, 0.0
    %v1143 = vsel %vm823, %v1102, 0.0
    %v1144 = vsel %vm824, %v1103, 0.0
    %v1145 = vsel %vm825, %v1104, 0.0
    %v1146 = vsel %vm826, %v1105, 0.0
    %v1147 = vsel %vm827, %v1106, 0.0
    %v1148 = vsel %vm828, %v1107, 0.0
    %v1149 = vpack.c.bf16 %v1141, %v1141
    %v1150 = vpack.c.bf16 %v1142, %v1142
    %v1151 = vpack.c.bf16 %v1143, %v1143
    %v1152 = vpack.c.bf16 %v1144, %v1144
    %v1153 = vpack.c.bf16 %v1145, %v1145
    %v1154 = vpack.c.bf16 %v1146, %v1146
    %v1155 = vpack.c.bf16 %v1147, %v1147
    %v1156 = vpack.c.bf16 %v1148, %v1148
    %1165 = vrot.lane.b32.xlu0 %v1149, 32
    %v1166 = vpop.permute.xlu0 %1165
    %1167 = vrot.lane.b32.xlu0 %v1150, 32
    %v1168 = vpop.permute.xlu0 %1167
    %1169 = vrot.lane.b32.xlu0 %v1151, 32
    %v1170 = vpop.permute.xlu0 %1169
    %1171 = vrot.lane.b32.xlu0 %v1152, 32
    %v1172 = vpop.permute.xlu0 %1171
    %1173 = vrot.lane.b32.xlu0 %v1153, 32
    %v1174 = vpop.permute.xlu0 %1173
    %1175 = vrot.lane.b32.xlu0 %v1154, 32
    %v1176 = vpop.permute.xlu0 %1175
    %1177 = vrot.lane.b32.xlu0 %v1155, 32
    %v1178 = vpop.permute.xlu0 %1177
    %1179 = vrot.lane.b32.xlu0 %v1156, 32
    %v1180 = vpop.permute.xlu0 %1179
    %1189 = vst.msk [vmem:[#allocation2] sm:$0xf] %vm322, %v1166
    %1190 = vst.msk [vmem:[#allocation2 + $0x4] sm:$0xf] %vm322, %v1168
    %1191 = vst.msk [vmem:[#allocation2 + $0x8] sm:$0xf] %vm322, %v1170
    %1192 = vst.msk [vmem:[#allocation2 + $0xc] sm:$0xf] %vm322, %v1172
    %1193 = vst.msk [vmem:[#allocation2 + $0x10] sm:$0xf] %vm322, %v1174
    %1194 = vst.msk [vmem:[#allocation2 + $0x14] sm:$0xf] %vm322, %v1176
    %1195 = vst.msk [vmem:[#allocation2 + $0x18] sm:$0xf] %vm322, %v1178
    %1196 = vst.msk [vmem:[#allocation2 + $0x1c] sm:$0xf] %vm322, %v1180
    %v1197 = vpack.c.bf16 %v1101, %v1101
    %v1198 = vpack.c.bf16 %v1102, %v1102
    %v1199 = vpack.c.bf16 %v1103, %v1103
    %v1200 = vpack.c.bf16 %v1104, %v1104
    %v1201 = vpack.c.bf16 %v1105, %v1105
    %v1202 = vpack.c.bf16 %v1106, %v1106
    %v1203 = vpack.c.bf16 %v1107, %v1107
    %v1204 = vpack.c.bf16 %v1108, %v1108
    %1213 = vrot.lane.b32.xlu0 %v1197, 64
    %v1214 = vpop.permute.xlu0 %1213
    %1215 = vrot.lane.b32.xlu0 %v1198, 64
    %v1216 = vpop.permute.xlu0 %1215
    %1217 = vrot.lane.b32.xlu0 %v1199, 64
    %v1218 = vpop.permute.xlu0 %1217
    %1219 = vrot.lane.b32.xlu0 %v1200, 64
    %v1220 = vpop.permute.xlu0 %1219
    %1221 = vrot.lane.b32.xlu0 %v1201, 64
    %v1222 = vpop.permute.xlu0 %1221
    %1223 = vrot.lane.b32.xlu0 %v1202, 64
    %v1224 = vpop.permute.xlu0 %1223
    %1225 = vrot.lane.b32.xlu0 %v1203, 64
    %v1226 = vpop.permute.xlu0 %1225
    %1227 = vrot.lane.b32.xlu0 %v1204, 64
    %v1228 = vpop.permute.xlu0 %1227
    %1237 = vst.msk [vmem:[#allocation2] sm:$0xf] %vm371, %v1214
    %1238 = vst.msk [vmem:[#allocation2 + $0x4] sm:$0xf] %vm371, %v1216
    %1239 = vst.msk [vmem:[#allocation2 + $0x8] sm:$0xf] %vm371, %v1218
    %1240 = vst.msk [vmem:[#allocation2 + $0xc] sm:$0xf] %vm371, %v1220
    %1241 = vst.msk [vmem:[#allocation2 + $0x10] sm:$0xf] %vm371, %v1222
    %1242 = vst.msk [vmem:[#allocation2 + $0x14] sm:$0xf] %vm371, %v1224
    %1243 = vst.msk [vmem:[#allocation2 + $0x18] sm:$0xf] %vm371, %v1226
    %1244 = vst.msk [vmem:[#allocation2 + $0x1c] sm:$0xf] %vm371, %v1228
    %v1245 = vld [vmem:[#allocation2] sm:$0xf]
    %v1246 = vld [vmem:[#allocation2 + $0x4] sm:$0xf]
    %v1247 = vld [vmem:[#allocation2 + $0x8] sm:$0xf]
    %v1248 = vld [vmem:[#allocation2 + $0xc] sm:$0xf]
    %v1249 = vld [vmem:[#allocation2 + $0x10] sm:$0xf]
    %v1250 = vld [vmem:[#allocation2 + $0x14] sm:$0xf]
    %v1251 = vld [vmem:[#allocation2 + $0x18] sm:$0xf]
    %v1252 = vld [vmem:[#allocation2 + $0x1c] sm:$0xf]
    %s1253 = scalar_lea.vmem %s1, 144
    %v1254 = vld [vmem:[%s1253] sm:$0xf]
    %v1255 = vld [vmem:[%s1253 + $0x4] sm:$0xf]
    %v1256 = vld [vmem:[%s1253 + $0x8] sm:$0xf]
    %v1257 = vld [vmem:[%s1253 + $0xc] sm:$0xf]
    %v1258 = vld [vmem:[%s1253 + $0x10] sm:$0xf]
    %v1259 = vld [vmem:[%s1253 + $0x14] sm:$0xf]
    %v1260 = vld [vmem:[%s1253 + $0x18] sm:$0xf]
    %v1261 = vld [vmem:[%s1253 + $0x1c] sm:$0xf]
    %v1262 = vld [vmem:[%s1253 + $0x20] sm:$0xf]
    %v1263 = vld [vmem:[%s1253 + $0x24] sm:$0xf]
    %v1264 = vld [vmem:[%s1253 + $0x28] sm:$0xf]
    %v1265 = vld [vmem:[%s1253 + $0x2c] sm:$0xf]
    %v1266 = vld [vmem:[%s2 + $0x7] sm:$0x1]
    %v1267 = vperm.slane %v1266, 0
    %v1276 = vunpack.c.l.b16 %v1245
    %v1277 = vunpack.c.l.b16 %v1246
    %v1278 = vunpack.c.l.b16 %v1247
    %v1279 = vunpack.c.l.b16 %v1248
    %v1280 = vunpack.c.l.b16 %v1249
    %v1281 = vunpack.c.l.b16 %v1250
    %v1282 = vunpack.c.l.b16 %v1251
    %v1283 = vunpack.c.l.b16 %v1252
    %v1284 = vpack.c.b16 %v1277, %v1276
    %v1285 = vpack.c.b16 %v1279, %v1278
    %v1286 = vpack.c.b16 %v1281, %v1280
    %v1287 = vpack.c.b16 %v1283, %v1282
    %v1300 = vunpack.c.l.b16 %v1254
    %v1301 = vunpack.c.l.b16 %v1255
    %v1302 = vunpack.c.l.b16 %v1256
    %v1303 = vunpack.c.l.b16 %v1257
    %v1304 = vunpack.c.l.b16 %v1258
    %v1305 = vunpack.c.l.b16 %v1259
    %v1306 = vunpack.c.l.b16 %v1260
    %v1307 = vunpack.c.l.b16 %v1261
    %v1308 = vunpack.c.l.b16 %v1262
    %v1309 = vunpack.c.l.b16 %v1263
    %v1310 = vunpack.c.l.b16 %v1264
    %v1311 = vunpack.c.l.b16 %v1265
    %v1312 = vpack.c.b16 %v1301, %v1300
    %v1313 = vpack.c.b16 %v1303, %v1302
    %v1314 = vpack.c.b16 %v1305, %v1304
    %v1315 = vpack.c.b16 %v1307, %v1306
    %v1316 = vpack.c.b16 %v1309, %v1308
    %v1317 = vpack.c.b16 %v1311, %v1310
    %v1325 = vsel %vm458, %v1284, 0
    %v1328 = vsel %vm458, %v1285, 0
    %v1331 = vsel %vm458, %v1286, 0
    %v1334 = vsel %vm458, %v1287, 0
    %1336 = vmatpush.bf16.msra.mxu0 0
    %1337 = vmatpush.bf16.msra.mxu0 0
    %1338 = vmatpush.bf16.msra.mxu0 %v1317
    %1339 = vmatpush.bf16.msra.mxu0 %v1316
    %1340 = vmatpush.bf16.msra.mxu0 %v1315
    %1341 = vmatpush.bf16.msra.mxu0 %v1314
    %1342 = vmatpush.bf16.msra.mxu0 %v1313
    %1343 = vmatpush.bf16.msra.mxu0 %v1312
    %1344 = vmatmul.bf16.gmra.mxu0 %v1325
    %v1345 = vpop.f32.mrf.mxu0
    %v1346 = vadd.f32 %v1267, %v1345
    %v1347 = vpop.f32.mrf.mxu0
    %v1348 = vadd.f32 %v1267, %v1347
    %1349 = vmatmul.bf16.gmra.mxu0 %v1328
    %v1350 = vpop.f32.mrf.mxu0
    %v1351 = vadd.f32 %v1267, %v1350
    %v1352 = vpop.f32.mrf.mxu0
    %v1353 = vadd.f32 %v1267, %v1352
    %1354 = vmatmul.bf16.gmra.mxu0 %v1331
    %v1355 = vpop.f32.mrf.mxu0
    %v1356 = vadd.f32 %v1267, %v1355
    %v1357 = vpop.f32.mrf.mxu0
    %v1358 = vadd.f32 %v1267, %v1357
    %1359 = vmatmul.bf16.gmra.mxu0 %v1334
    %v1360 = vpop.f32.mrf.mxu0
    %v1361 = vadd.f32 %v1267, %v1360
    %v1362 = vpop.f32.mrf.mxu0
    %v1363 = vadd.f32 %v1267, %v1362
    %1364 = vdwg.mxu0
    %v1365 = vmax.f32 %v1346, 0.0
    %v1366 = vmax.f32 %v1348, 0.0
    %v1367 = vmax.f32 %v1351, 0.0
    %v1368 = vmax.f32 %v1353, 0.0
    %v1369 = vmax.f32 %v1356, 0.0
    %v1370 = vmax.f32 %v1358, 0.0
    %v1371 = vmax.f32 %v1361, 0.0
    %v1372 = vmax.f32 %v1363, 0.0
    %v1373 = vadd.f32 %v1101, %v1365
    %v1374 = vadd.f32 %v1102, %v1366
    %v1375 = vadd.f32 %v1103, %v1367
    %v1376 = vadd.f32 %v1104, %v1368
    %v1377 = vadd.f32 %v1105, %v1369
    %v1378 = vadd.f32 %v1106, %v1370
    %v1379 = vadd.f32 %v1107, %v1371
    %v1380 = vadd.f32 %v1108, %v1372
    %1382 = vset.pattern.permute.xlu0 0
    %1383 = vperm.xlu0 %1382, %v27
    %v1384 = vpop.permute.xlu0 %1383
    %vm1386 = vcmask 261120
    %v1388 = vsel %vm1386, %v26, 0
    %v1391 = vsel %vm1386, %v1373, 0
    %v1394 = vsel %vm1386, %v1374, 0
    %v1397 = vsel %vm1386, %v1375, 0
    %v1400 = vsel %vm1386, %v1376, 0
    %v1403 = vsel %vm1386, %v1377, 0
    %v1406 = vsel %vm1386, %v1378, 0
    %v1409 = vsel %vm1386, %v1379, 0
    %v1412 = vsel %vm1386, %v1380, 0
    %1414 = vmatpush.xpose.msra.mxu0 0.0
    %1415 = vmatpush.xpose.msra.mxu0 0.0
    %1416 = vmatpush.xpose.msra.mxu0 0.0
    %1417 = vmatpush.xpose.msra.mxu0 0.0
    %1418 = vmatpush.xpose.msra.mxu0 0.0
    %1419 = vmatpush.xpose.msra.mxu0 0.0
    %1420 = vmatpush.xpose.msra.mxu0 0.0
    %1421 = vmatpush.xpose.msra.mxu0 0.0
    %1422 = vmatpush.xpose.msra.mxu0 %v1412
    %1423 = vmatpush.xpose.msra.mxu0 %v1409
    %1424 = vmatpush.xpose.msra.mxu0 %v1406
    %1425 = vmatpush.xpose.msra.mxu0 %v1403
    %1426 = vmatpush.xpose.msra.mxu0 %v1400
    %1427 = vmatpush.xpose.msra.mxu0 %v1397
    %1428 = vmatpush.xpose.msra.mxu0 %v1394
    %1429 = vmatpush.xpose.msra.mxu0 %v1391
    %1430 = vmatmul.f32.gmra.mxu0 %v1388
    %v1431 = vpop.f32.mrf.mxu0
    %v1432 = vadd.f32 %v1384, %v1431
    %1433 = vdwg.mxu0
    %vm1434 = vcmask 516096
    %1435 = vst.msk [vmem:[#allocation3] sm:$0x1] %vm1434, %v1432
    // Predicated region
    $region14: #{tpu_custom_call.1} parent=1 // pred_check
      _
    $region15: #{tpu_custom_call.1} parent=1 // pred_check_branch
      %1437 = sbr.rel (0) target = $region17
    $region16: #{tpu_custom_call.1} parent=1 // pred_region
      %1439 = vsyncadd [#allocation4], 0
      %s1441 = sshll.u32 [#allocation3], 4
      %s1442 = int_to_ptr.vmem [resolvable:$true] %s1441
      %s1443 = sshll.u32 %s3, 4
      %s1444 = int_to_ptr.hbm [resolvable:$true] %s1443
      %1446 = dma.vmem_to_hbm [thread:$0]  %s1442, 16, %s1444, [#allocation4]
    $region17: #{tpu_custom_call.1} parent=1 // pred_fallthru
      _
    // Predicated region
    $region18: #{tpu_custom_call.1} parent=1 // pred_check
      _
    $region19: #{tpu_custom_call.1} parent=1 // pred_check_branch
      %1448 = sbr.rel (0) target = $region21
    $region20: #{tpu_custom_call.1} parent=1 // pred_region
      %1450 = dma.done [#allocation4], 16
    $region21: #{tpu_custom_call.1} parent=1 // pred_fallthru
      _
    %1451 = vsyncpa [#allocation4], 1

</llo_original>
